<compile_context>
chip_gen: v7x
topology: tpu7x:2x2x1
jax: 0.10.0
libtpu: 0.0.40
codegen_flags: <defaults>
</compile_context>

<pallas_src>
import math
from typing import NamedTuple, Tuple

import jax
import jax.numpy as jnp
from jax.experimental import pallas as pl
from jax.experimental.pallas import tpu as pltpu


_LANE = 128
_SUBLANE_BF16 = 16


def _round_up(n, m):
    return ((n + m - 1) // m) * m


def _cdiv(a, b):
    return (a + b - 1) // b


def _default_epilogue_dtype():
    """bf16 epilogue on v6e/v7x (bf16 VPU available); f32 on v5e/older."""
    try:
        kind = jax.devices()[0].device_kind.lower()
    except Exception:
        return jnp.float32
    if "v6" in kind or "v7" in kind or "tpu7" in kind:
        return jnp.bfloat16
    return jnp.float32


class PreparedParams(NamedTuple):
    weights: Tuple[jax.Array, ...]   # bf16 (K_i, N_i_pad); K_0 = in_dim unpadded
    bias_packed: jax.Array           # (L, N_max) in epilogue dtype
    out_dims_pad: Tuple[int, ...]    # padded output dim per layer
    in_dim: int
    out_dim: int
    epilogue_dtype: object


def prepare_params(params, epilogue_dtype=None):
    """One-time pad / bf16-cast / bias-pack of ParamEstVec weights.

    params: list of (W, b) with W of shape (in_features, out_features),
            ordered [in_transform, hiddens..., hidden->256, out_transform].

    Hoisted out of the forward pass so repeated inference does not re-pad /
    re-cast every weight in HBM on every call.
    """
    if epilogue_dtype is None:
        epilogue_dtype = _default_epilogue_dtype()
    in_dim = params[0][0].shape[0]
    out_dim = params[-1][0].shape[1]

    weights, biases, out_dims_pad = [], [], []
    prev = in_dim  # layer-0 contraction dim stays unpadded (x is fed as-is)
    for (w, b) in params:
        k, n = w.shape
        n_pad = _round_up(n, _LANE)
        assert k <= prev, "layer dims must chain"
        # Zero padding is exact: padded K rows only ever multiply activations
        # that are exactly zero; padded N columns produce zero activations
        # (and LeakyReLU(0) == 0).
        w_p = jnp.pad(w.astype(jnp.float32), ((0, prev - k), (0, n_pad - n)))
        weights.append(w_p.astype(jnp.bfloat16))
        biases.append(jnp.pad(b.astype(jnp.float32), (0, n_pad - n)))
        out_dims_pad.append(n_pad)
        prev = n_pad

    # Pack the L bias vectors into a single resident (L, N_max) ref.
    n_max = max(out_dims_pad)
    bias_packed = jnp.stack(
        [jnp.pad(b, (0, n_max - b.shape[0])) for b in biases]
    ).astype(epilogue_dtype)

    return PreparedParams(tuple(weights), bias_packed, tuple(out_dims_pad),
                          in_dim, out_dim, epilogue_dtype)


def _make_mlp_kernel(out_dims_pad, epilogue_dtype):
    """Fused MLP kernel for a fixed (static) number of linear layers."""
    n_layers = len(out_dims_pad)

    def kernel(x_ref, b_ref, *rest):
        # rest = (w0, w1, ..., w_{L-1}, out_ref)
        out_ref = rest[-1]
        w_refs = rest[:-1]
        b_all = b_ref[...]                      # (L, N_max), epilogue dtype
        h = x_ref[...]                          # bf16 (tm, in_dim)
        for i in range(n_layers):
            n_pad = out_dims_pad[i]
            # bf16 MXU operands, f32 accumulation.
            acc = jnp.dot(h, w_refs[i][...],
                          preferred_element_type=jnp.float32)   # (tm, n_pad) f32
            b = b_all[i:i + 1, :n_pad]          # (1, n_pad), static slice
            if i < n_layers - 1:
                # Bias add + LeakyReLU(0.2) in the epilogue dtype
                # (bf16 on v6e/v7x, f32 on v5e).  max(h, 0.2*h) is exact
                # LeakyReLU for slope < 1.
                hb = acc.astype(epilogue_dtype) + b
                hb = jnp.maximum(hb, 0.2 * hb)
                h = hb.astype(jnp.bfloat16)     # next MXU operand
            else:
                # out_transform: no activation; final bias add in f32.
                out_ref[...] = (acc + b.astype(jnp.float32)).astype(out_ref.dtype)

    return kernel


def param_est_vec_forward(x, prepared: PreparedParams, *, tile_m=512,
                          out_dtype=jnp.float32, return_padded=False):
    """Full ParamEstVec forward pass in a single fused Pallas kernel.

    x:        (batch, in_dim) float32 (or bf16)
    prepared: output of prepare_params (padded bf16 weights, packed biases).
    """
    batch, in_dim = x.shape
    assert in_dim == prepared.in_dim
    weights = prepared.weights
    bias_packed = prepared.bias_packed
    out_pad = prepared.out_dims_pad[-1]
    n_max = max(prepared.out_dims_pad)

    # ---- Batch tiling (bf16 activations -> sublane packing of 16) ----------
    batch16 = _round_up(batch, _SUBLANE_BF16)
    tm = min(_round_up(tile_m, _SUBLANE_BF16), batch16)
    if batch16 >= 2 * _SUBLANE_BF16:
        # Guarantee >= 2 batch blocks so ("parallel",) can shard across both
        # TensorCores on v7x.
        tm = min(tm, _round_up(_cdiv(batch16, 2), _SUBLANE_BF16))
    batch_pad = _round_up(batch, tm)
    grid = (batch_pad // tm,)

    # x: cast to bf16 (halves activation DMA bytes) and pad batch only; the
    # feature dim is NOT padded to 128 — full-last-dim blocks are legal and
    # Mosaic pads K inside VMEM for the MXU.
    x_p = jnp.pad(x.astype(jnp.bfloat16), ((0, batch_pad - batch), (0, 0)))

    # ---- Explicit VMEM budgeting -------------------------------------------
    out_itemsize = jnp.dtype(out_dtype).itemsize
    resident_bytes = (sum(int(w.size) * w.dtype.itemsize for w in weights)
                      + int(bias_packed.size) * bias_packed.dtype.itemsize)
    stream_bytes = 2 * (tm * in_dim * 2) + 2 * (tm * out_pad * out_itemsize)
    act_bytes = 3 * tm * n_max * 4          # f32 accumulator + epilogue temps (rough)
    # TODO(synk): if resident weights approach tens of MiB (large hidden_dim /
    # num_hiddens), switch from fully-resident weights to a layer/K grid axis.

    def _vmem_limit(weight_buffers):
        need = weight_buffers * resident_bytes + stream_bytes + act_bytes
        return int(min(max(2 * need, 16 * 1024 * 1024), 64 * 1024 * 1024))

    kernel = _make_mlp_kernel(prepared.out_dims_pad, prepared.epilogue_dtype)
    out_shape = jax.ShapeDtypeStruct((batch_pad, out_pad), out_dtype)

    def _run(single_buffer_weights):
        # Resident (constant-index) refs: weights + packed biases; request
        # single buffering so the resident VMEM footprint is not doubled.
        resident_kwargs = (
            {"pipeline_mode": pl.Buffered(1)} if single_buffer_weights else {}
        )
        in_specs = [
            pl.BlockSpec((tm, in_dim), lambda i: (i, 0)),
            pl.BlockSpec(bias_packed.shape, lambda i: (0, 0), **resident_kwargs),
        ]
        for w in weights:
            in_specs.append(
                pl.BlockSpec(w.shape, lambda i: (0, 0), **resident_kwargs))
        return pl.pallas_call(
            kernel,
            out_shape=out_shape,
            grid=grid,
            in_specs=in_specs,
            out_specs=pl.BlockSpec((tm, out_pad), lambda i: (i, 0)),
            compiler_params=pltpu.CompilerParams(
                dimension_semantics=("parallel",),
                vmem_limit_bytes=_vmem_limit(1 if single_buffer_weights else 2),
            ),
        )(x_p, bias_packed, *weights)

    try:
        y_pad = _run(True)
    except Exception:
        # Fallback for toolchains where pipeline_mode=pl.Buffered(1) is not
        # supported on the pallas_call pipeline: default double-buffering.
        y_pad = _run(False)

    if return_padded:
        # Lane-dense padded slab; caller slices lazily (saves an HBM pass).
        return y_pad
    return y_pad[:batch, :prepared.out_dim]


def init_param_est_vec_params(key, hidden_dim, num_hiddens, in_dim, output_size):
    """Deterministic init mimicking PyTorch nn.Linear default
    (uniform(-1/sqrt(fan_in), 1/sqrt(fan_in))). Weights stored as (in, out)."""
    layer_dims = (
        [(in_dim, hidden_dim)]
        + [(hidden_dim, hidden_dim) for _ in range(num_hiddens)]
        + [(hidden_dim, 256)]
        + [(256, output_size)]
    )
    params = []
    for (fan_in, fan_out) in layer_dims:
        key, kw, kb = jax.random.split(key, 3)
        bound = 1.0 / math.sqrt(fan_in)
        w = jax.random.uniform(
            kw, (fan_in, fan_out), minval=-bound, maxval=bound, dtype=jnp.float32)
        b = jax.random.uniform(
            kb, (fan_out,), minval=-bound, maxval=bound, dtype=jnp.float32)
        params.append((w, b))
    return params


def param_est_vec_reference_f32(x, params):
    """Pure-JAX full-f32 reference of the same forward pass."""
    h = x.astype(jnp.float32)
    n = len(params)
    for i, (w, b) in enumerate(params):
        h = h @ w.astype(jnp.float32) + b.astype(jnp.float32)
        if i < n - 1:
            h = jnp.maximum(h, 0.2 * h)
    return h


def param_est_vec_reference_matched(x, params, epilogue_dtype):
    """Pure-JAX reference matching the kernel's dtype recipe exactly:
    bf16 x / bf16 weights, f32 MXU accumulation, bias-add + LeakyReLU in
    `epilogue_dtype`, final bias-add in f32."""
    h = x.astype(jnp.bfloat16)
    n = len(params)
    out = None
    for i, (w, b) in enumerate(params):
        acc = jnp.dot(h, w.astype(jnp.bfloat16),
                      preferred_element_type=jnp.float32)
        b_ep = b.astype(jnp.float32).astype(epilogue_dtype)
        if i < n - 1:
            hb = acc.astype(epilogue_dtype) + b_ep
            hb = jnp.maximum(hb, 0.2 * hb)
            h = hb.astype(jnp.bfloat16)
        else:
            out = acc + b_ep.astype(jnp.float32)
    return out


if __name__ == "__main__":
    # Small, module-consistent shapes.
    batch = 8
    in_dim = 32
    hidden_dim = 64
    num_hiddens = 2
    output_size = 6

    key = jax.random.PRNGKey(0)
    key, kx = jax.random.split(key)
    x = jax.random.normal(kx, (batch, in_dim), dtype=jnp.float32)

    params = init_param_est_vec_params(
        key, hidden_dim, num_hiddens, in_dim, output_size)
    prepared = prepare_params(params)   # one-time pad / cast / pack

    out = param_est_vec_forward(x, prepared)
    out = jax.block_until_ready(out)
    assert out.shape == (batch, output_size)

    # Tight check vs a reference using the kernel's exact dtype recipe.
    ref_matched = param_est_vec_reference_matched(x, params, prepared.epilogue_dtype)
    assert jnp.allclose(out, ref_matched, atol=5e-3, rtol=5e-3), \
        "mismatch vs dtype-matched reference"

    # Loose check vs the full-f32 reference (bf16 matmul/epilogue trade-off).
    ref_f32 = param_est_vec_reference_f32(x, params)
    assert jnp.allclose(out, ref_f32, atol=5e-2, rtol=5e-2), \
        "mismatch vs f32 reference"

    print("KERNEL_OK")
</pallas_src>

<mosaic_0001>
module attributes {stable_mosaic.version = 11 : i64} {
  func.func @kernel(%arg0: i32, %arg1: memref<16x32xbf16, #tpu.memory_space<vmem>>, %arg2: memref<5x256xf32, #tpu.memory_space<vmem>>, %arg3: memref<32x128xbf16, #tpu.memory_space<vmem>>, %arg4: memref<128x128xbf16, #tpu.memory_space<vmem>>, %arg5: memref<128x128xbf16, #tpu.memory_space<vmem>>, %arg6: memref<128x256xbf16, #tpu.memory_space<vmem>>, %arg7: memref<256x128xbf16, #tpu.memory_space<vmem>>, %arg8: memref<16x128xf32, #tpu.memory_space<vmem>>) attributes {dimension_semantics = [#tpu.dimension_semantics<parallel>], iteration_bounds = array<i64: 1>, scalar_prefetch = 0 : i64, scratch_operands = 0 : i64, tpu.core_type = #tpu.core_type<tc>, window_params = [{transform_indices = @transform_0, window_bounds = array<i64: 16, 32>}, {pipeline_mode = #tpu.pipeline_mode<synchronous>, transform_indices = @transform_1, window_bounds = array<i64: 5, 256>}, {pipeline_mode = #tpu.pipeline_mode<synchronous>, transform_indices = @transform_2, window_bounds = array<i64: 32, 128>}, {pipeline_mode = #tpu.pipeline_mode<synchronous>, transform_indices = @transform_3, window_bounds = array<i64: 128, 128>}, {pipeline_mode = #tpu.pipeline_mode<synchronous>, transform_indices = @transform_4, window_bounds = array<i64: 128, 128>}, {pipeline_mode = #tpu.pipeline_mode<synchronous>, transform_indices = @transform_5, window_bounds = array<i64: 128, 256>}, {pipeline_mode = #tpu.pipeline_mode<synchronous>, transform_indices = @transform_6, window_bounds = array<i64: 256, 128>}, {transform_indices = @transform_7, window_bounds = array<i64: 16, 128>}]} {
    %c0 = arith.constant 0 : index
    %c0_0 = arith.constant 0 : index
    %0 = vector.load %arg2[%c0, %c0_0] : memref<5x256xf32, #tpu.memory_space<vmem>>, vector<5x256xf32>
    %c0_1 = arith.constant 0 : index
    %c0_2 = arith.constant 0 : index
    %1 = vector.load %arg1[%c0_1, %c0_2] : memref<16x32xbf16, #tpu.memory_space<vmem>>, vector<16x32xbf16>
    %c0_3 = arith.constant 0 : index
    %c0_4 = arith.constant 0 : index
    %2 = vector.load %arg3[%c0_3, %c0_4] : memref<32x128xbf16, #tpu.memory_space<vmem>>, vector<32x128xbf16>
    %cst = arith.constant dense<0.000000e+00> : vector<16x128xf32>
    %3 = tpu.matmul %1, %2, %cst {dimension_numbers = #tpu.dot_dimension_numbers<[1], [0], [0], [1], [0, 0, 1, 1], [], []>} : vector<16x32xbf16>, vector<32x128xbf16>, vector<16x128xf32> -> vector<16x128xf32>
    %4 = vector.extract_strided_slice %0 {offsets = [0, 0], sizes = [1, 128], strides = [1, 1]} : vector<5x256xf32> to vector<1x128xf32>
    %5 = vector.broadcast %4 : vector<1x128xf32> to vector<16x128xf32>
    %6 = arith.addf %3, %5 : vector<16x128xf32>
    %cst_5 = arith.constant 2.000000e-01 : f32
    %7 = vector.broadcast %cst_5 : f32 to vector<16x128xf32>
    %8 = arith.mulf %7, %6 : vector<16x128xf32>
    %9 = arith.maximumf %6, %8 : vector<16x128xf32>
    %10 = arith.truncf %9 : vector<16x128xf32> to vector<16x128xbf16>
    %c0_6 = arith.constant 0 : index
    %c0_7 = arith.constant 0 : index
    %11 = vector.load %arg4[%c0_6, %c0_7] : memref<128x128xbf16, #tpu.memory_space<vmem>>, vector<128x128xbf16>
    %cst_8 = arith.constant dense<0.000000e+00> : vector<16x128xf32>
    %12 = tpu.matmul %10, %11, %cst_8 {dimension_numbers = #tpu.dot_dimension_numbers<[1], [0], [0], [1], [0, 0, 1, 1], [], []>} : vector<16x128xbf16>, vector<128x128xbf16>, vector<16x128xf32> -> vector<16x128xf32>
    %13 = vector.extract_strided_slice %0 {offsets = [1, 0], sizes = [1, 128], strides = [1, 1]} : vector<5x256xf32> to vector<1x128xf32>
    %14 = vector.broadcast %13 : vector<1x128xf32> to vector<16x128xf32>
    %15 = arith.addf %12, %14 : vector<16x128xf32>
    %cst_9 = arith.constant 2.000000e-01 : f32
    %16 = vector.broadcast %cst_9 : f32 to vector<16x128xf32>
    %17 = arith.mulf %16, %15 : vector<16x128xf32>
    %18 = arith.maximumf %15, %17 : vector<16x128xf32>
    %19 = arith.truncf %18 : vector<16x128xf32> to vector<16x128xbf16>
    %c0_10 = arith.constant 0 : index
    %c0_11 = arith.constant 0 : index
    %20 = vector.load %arg5[%c0_10, %c0_11] : memref<128x128xbf16, #tpu.memory_space<vmem>>, vector<128x128xbf16>
    %cst_12 = arith.constant dense<0.000000e+00> : vector<16x128xf32>
    %21 = tpu.matmul %19, %20, %cst_12 {dimension_numbers = #tpu.dot_dimension_numbers<[1], [0], [0], [1], [0, 0, 1, 1], [], []>} : vector<16x128xbf16>, vector<128x128xbf16>, vector<16x128xf32> -> vector<16x128xf32>
    %22 = vector.extract_strided_slice %0 {offsets = [2, 0], sizes = [1, 128], strides = [1, 1]} : vector<5x256xf32> to vector<1x128xf32>
    %23 = vector.broadcast %22 : vector<1x128xf32> to vector<16x128xf32>
    %24 = arith.addf %21, %23 : vector<16x128xf32>
    %cst_13 = arith.constant 2.000000e-01 : f32
    %25 = vector.broadcast %cst_13 : f32 to vector<16x128xf32>
    %26 = arith.mulf %25, %24 : vector<16x128xf32>
    %27 = arith.maximumf %24, %26 : vector<16x128xf32>
    %28 = arith.truncf %27 : vector<16x128xf32> to vector<16x128xbf16>
    %c0_14 = arith.constant 0 : index
    %c0_15 = arith.constant 0 : index
    %29 = vector.load %arg6[%c0_14, %c0_15] : memref<128x256xbf16, #tpu.memory_space<vmem>>, vector<128x256xbf16>
    %cst_16 = arith.constant dense<0.000000e+00> : vector<16x256xf32>
    %30 = tpu.matmul %28, %29, %cst_16 {dimension_numbers = #tpu.dot_dimension_numbers<[1], [0], [0], [1], [0, 0, 1, 1], [], []>} : vector<16x128xbf16>, vector<128x256xbf16>, vector<16x256xf32> -> vector<16x256xf32>
    %31 = vector.extract_strided_slice %0 {offsets = [3, 0], sizes = [1, 256], strides = [1, 1]} : vector<5x256xf32> to vector<1x256xf32>
    %32 = vector.broadcast %31 : vector<1x256xf32> to vector<16x256xf32>
    %33 = arith.addf %30, %32 : vector<16x256xf32>
    %cst_17 = arith.constant 2.000000e-01 : f32
    %34 = vector.broadcast %cst_17 : f32 to vector<16x256xf32>
    %35 = arith.mulf %34, %33 : vector<16x256xf32>
    %36 = arith.maximumf %33, %35 : vector<16x256xf32>
    %37 = arith.truncf %36 : vector<16x256xf32> to vector<16x256xbf16>
    %c0_18 = arith.constant 0 : index
    %c0_19 = arith.constant 0 : index
    %38 = vector.load %arg7[%c0_18, %c0_19] : memref<256x128xbf16, #tpu.memory_space<vmem>>, vector<256x128xbf16>
    %cst_20 = arith.constant dense<0.000000e+00> : vector<16x128xf32>
    %39 = tpu.matmul %37, %38, %cst_20 {dimension_numbers = #tpu.dot_dimension_numbers<[1], [0], [0], [1], [0, 0, 1, 1], [], []>} : vector<16x256xbf16>, vector<256x128xbf16>, vector<16x128xf32> -> vector<16x128xf32>
    %40 = vector.extract_strided_slice %0 {offsets = [4, 0], sizes = [1, 128], strides = [1, 1]} : vector<5x256xf32> to vector<1x128xf32>
    %41 = vector.broadcast %40 : vector<1x128xf32> to vector<16x128xf32>
    %42 = arith.addf %39, %41 : vector<16x128xf32>
    %c0_21 = arith.constant 0 : index
    %c0_22 = arith.constant 0 : index
    %43 = vector.load %arg8[%c0_21, %c0_22] : memref<16x128xf32, #tpu.memory_space<vmem>>, vector<16x128xf32>
    tpu.vector_store %arg8[%c0_21, %c0_22], %42 {strides = array<i32>} : memref<16x128xf32, #tpu.memory_space<vmem>>, vector<16x128xf32>,
    return
  }
  func.func @transform_0(%arg0: i32) -> (i32, i32) {
    %c0_i32 = arith.constant 0 : i32
    %c0_i32_0 = arith.constant 0 : i32
    return %arg0, %c0_i32 : i32, i32
  }
  func.func @transform_1(%arg0: i32) -> (i32, i32) {
    %c0_i32 = arith.constant 0 : i32
    %c0_i32_0 = arith.constant 0 : i32
    %c0_i32_1 = arith.constant 0 : i32
    return %c0_i32, %c0_i32_0 : i32, i32
  }
  func.func @transform_2(%arg0: i32) -> (i32, i32) {
    %c0_i32 = arith.constant 0 : i32
    %c0_i32_0 = arith.constant 0 : i32
    %c0_i32_1 = arith.constant 0 : i32
    return %c0_i32, %c0_i32_0 : i32, i32
  }
  func.func @transform_3(%arg0: i32) -> (i32, i32) {
    %c0_i32 = arith.constant 0 : i32
    %c0_i32_0 = arith.constant 0 : i32
    %c0_i32_1 = arith.constant 0 : i32
    return %c0_i32, %c0_i32_0 : i32, i32
  }
  func.func @transform_4(%arg0: i32) -> (i32, i32) {
    %c0_i32 = arith.constant 0 : i32
    %c0_i32_0 = arith.constant 0 : i32
    %c0_i32_1 = arith.constant 0 : i32
    return %c0_i32, %c0_i32_0 : i32, i32
  }
  func.func @transform_5(%arg0: i32) -> (i32, i32) {
    %c0_i32 = arith.constant 0 : i32
    %c0_i32_0 = arith.constant 0 : i32
    %c0_i32_1 = arith.constant 0 : i32
    return %c0_i32, %c0_i32_0 : i32, i32
  }
  func.func @transform_6(%arg0: i32) -> (i32, i32) {
    %c0_i32 = arith.constant 0 : i32
    %c0_i32_0 = arith.constant 0 : i32
    %c0_i32_1 = arith.constant 0 : i32
    return %c0_i32, %c0_i32_0 : i32, i32
  }
  func.func @transform_7(%arg0: i32) -> (i32, i32) {
    %c0_i32 = arith.constant 0 : i32
    %c0_i32_0 = arith.constant 0 : i32
    return %arg0, %c0_i32 : i32, i32
  }
}

module attributes {stable_mosaic.version = 11 : i64} {
  func.func @kernel(%arg0: i32, %arg1: memref<16x32xbf16, #tpu.memory_space<vmem>>, %arg2: memref<5x256xf32, #tpu.memory_space<vmem>>, %arg3: memref<32x128xbf16, #tpu.memory_space<vmem>>, %arg4: memref<128x128xbf16, #tpu.memory_space<vmem>>, %arg5: memref<128x128xbf16, #tpu.memory_space<vmem>>, %arg6: memref<128x256xbf16, #tpu.memory_space<vmem>>, %arg7: memref<256x128xbf16, #tpu.memory_space<vmem>>, %arg8: memref<16x128xf32, #tpu.memory_space<vmem>>) attributes {dimension_semantics = [#tpu.dimension_semantics<parallel>], iteration_bounds = array<i64: 1>, scalar_prefetch = 0 : i64, scratch_operands = 0 : i64, tpu.core_type = #tpu.core_type<tc>, window_params = [{transform_indices = @transform_0, window_bounds = array<i64: 16, 32>}, {pipeline_mode = #tpu.pipeline_mode<synchronous>, transform_indices = @transform_1, window_bounds = array<i64: 5, 256>}, {pipeline_mode = #tpu.pipeline_mode<synchronous>, transform_indices = @transform_2, window_bounds = array<i64: 32, 128>}, {pipeline_mode = #tpu.pipeline_mode<synchronous>, transform_indices = @transform_3, window_bounds = array<i64: 128, 128>}, {pipeline_mode = #tpu.pipeline_mode<synchronous>, transform_indices = @transform_4, window_bounds = array<i64: 128, 128>}, {pipeline_mode = #tpu.pipeline_mode<synchronous>, transform_indices = @transform_5, window_bounds = array<i64: 128, 256>}, {pipeline_mode = #tpu.pipeline_mode<synchronous>, transform_indices = @transform_6, window_bounds = array<i64: 256, 128>}, {transform_indices = @transform_7, window_bounds = array<i64: 16, 128>}]} {
    %c0 = arith.constant 0 : index
    %c0_0 = arith.constant 0 : index
    %0 = vector.load %arg2[%c0, %c0_0] : memref<5x256xf32, #tpu.memory_space<vmem>>, vector<5x256xf32>
    %c0_1 = arith.constant 0 : index
    %c0_2 = arith.constant 0 : index
    %1 = vector.load %arg1[%c0_1, %c0_2] : memref<16x32xbf16, #tpu.memory_space<vmem>>, vector<16x32xbf16>
    %c0_3 = arith.constant 0 : index
    %c0_4 = arith.constant 0 : index
    %2 = vector.load %arg3[%c0_3, %c0_4] : memref<32x128xbf16, #tpu.memory_space<vmem>>, vector<32x128xbf16>
    %cst = arith.constant dense<0.000000e+00> : vector<16x128xf32>
    %3 = tpu.matmul %1, %2, %cst {dimension_numbers = #tpu.dot_dimension_numbers<[1], [0], [0], [1], [0, 0, 1, 1], [], []>} : vector<16x32xbf16>, vector<32x128xbf16>, vector<16x128xf32> -> vector<16x128xf32>
    %4 = vector.extract_strided_slice %0 {offsets = [0, 0], sizes = [1, 128], strides = [1, 1]} : vector<5x256xf32> to vector<1x128xf32>
    %5 = vector.broadcast %4 : vector<1x128xf32> to vector<16x128xf32>
    %6 = arith.addf %3, %5 : vector<16x128xf32>
    %cst_5 = arith.constant 2.000000e-01 : f32
    %7 = vector.broadcast %cst_5 : f32 to vector<16x128xf32>
    %8 = arith.mulf %7, %6 : vector<16x128xf32>
    %9 = arith.maximumf %6, %8 : vector<16x128xf32>
    %10 = arith.truncf %9 : vector<16x128xf32> to vector<16x128xbf16>
    %c0_6 = arith.constant 0 : index
    %c0_7 = arith.constant 0 : index
    %11 = vector.load %arg4[%c0_6, %c0_7] : memref<128x128xbf16, #tpu.memory_space<vmem>>, vector<128x128xbf16>
    %cst_8 = arith.constant dense<0.000000e+00> : vector<16x128xf32>
    %12 = tpu.matmul %10, %11, %cst_8 {dimension_numbers = #tpu.dot_dimension_numbers<[1], [0], [0], [1], [0, 0, 1, 1], [], []>} : vector<16x128xbf16>, vector<128x128xbf16>, vector<16x128xf32> -> vector<16x128xf32>
    %13 = vector.extract_strided_slice %0 {offsets = [1, 0], sizes = [1, 128], strides = [1, 1]} : vector<5x256xf32> to vector<1x128xf32>
    %14 = vector.broadcast %13 : vector<1x128xf32> to vector<16x128xf32>
    %15 = arith.addf %12, %14 : vector<16x128xf32>
    %cst_9 = arith.constant 2.000000e-01 : f32
    %16 = vector.broadcast %cst_9 : f32 to vector<16x128xf32>
    %17 = arith.mulf %16, %15 : vector<16x128xf32>
    %18 = arith.maximumf %15, %17 : vector<16x128xf32>
    %19 = arith.truncf %18 : vector<16x128xf32> to vector<16x128xbf16>
    %c0_10 = arith.constant 0 : index
    %c0_11 = arith.constant 0 : index
    %20 = vector.load %arg5[%c0_10, %c0_11] : memref<128x128xbf16, #tpu.memory_space<vmem>>, vector<128x128xbf16>
    %cst_12 = arith.constant dense<0.000000e+00> : vector<16x128xf32>
    %21 = tpu.matmul %19, %20, %cst_12 {dimension_numbers = #tpu.dot_dimension_numbers<[1], [0], [0], [1], [0, 0, 1, 1], [], []>} : vector<16x128xbf16>, vector<128x128xbf16>, vector<16x128xf32> -> vector<16x128xf32>
    %22 = vector.extract_strided_slice %0 {offsets = [2, 0], sizes = [1, 128], strides = [1, 1]} : vector<5x256xf32> to vector<1x128xf32>
    %23 = vector.broadcast %22 : vector<1x128xf32> to vector<16x128xf32>
    %24 = arith.addf %21, %23 : vector<16x128xf32>
    %cst_13 = arith.constant 2.000000e-01 : f32
    %25 = vector.broadcast %cst_13 : f32 to vector<16x128xf32>
    %26 = arith.mulf %25, %24 : vector<16x128xf32>
    %27 = arith.maximumf %24, %26 : vector<16x128xf32>
    %28 = arith.truncf %27 : vector<16x128xf32> to vector<16x128xbf16>
    %c0_14 = arith.constant 0 : index
    %c0_15 = arith.constant 0 : index
    %29 = vector.load %arg6[%c0_14, %c0_15] : memref<128x256xbf16, #tpu.memory_space<vmem>>, vector<128x256xbf16>
    %cst_16 = arith.constant dense<0.000000e+00> : vector<16x256xf32>
    %30 = tpu.matmul %28, %29, %cst_16 {dimension_numbers = #tpu.dot_dimension_numbers<[1], [0], [0], [1], [0, 0, 1, 1], [], []>} : vector<16x128xbf16>, vector<128x256xbf16>, vector<16x256xf32> -> vector<16x256xf32>
    %31 = vector.extract_strided_slice %0 {offsets = [3, 0], sizes = [1, 256], strides = [1, 1]} : vector<5x256xf32> to vector<1x256xf32>
    %32 = vector.broadcast %31 : vector<1x256xf32> to vector<16x256xf32>
    %33 = arith.addf %30, %32 : vector<16x256xf32>
    %cst_17 = arith.constant 2.000000e-01 : f32
    %34 = vector.broadcast %cst_17 : f32 to vector<16x256xf32>
    %35 = arith.mulf %34, %33 : vector<16x256xf32>
    %36 = arith.maximumf %33, %35 : vector<16x256xf32>
    %37 = arith.truncf %36 : vector<16x256xf32> to vector<16x256xbf16>
    %c0_18 = arith.constant 0 : index
    %c0_19 = arith.constant 0 : index
    %38 = vector.load %arg7[%c0_18, %c0_19] : memref<256x128xbf16, #tpu.memory_space<vmem>>, vector<256x128xbf16>
    %cst_20 = arith.constant dense<0.000000e+00> : vector<16x128xf32>
    %39 = tpu.matmul %37, %38, %cst_20 {dimension_numbers = #tpu.dot_dimension_numbers<[1], [0], [0], [1], [0, 0, 1, 1], [], []>} : vector<16x256xbf16>, vector<256x128xbf16>, vector<16x128xf32> -> vector<16x128xf32>
    %40 = vector.extract_strided_slice %0 {offsets = [4, 0], sizes = [1, 128], strides = [1, 1]} : vector<5x256xf32> to vector<1x128xf32>
    %41 = vector.broadcast %40 : vector<1x128xf32> to vector<16x128xf32>
    %42 = arith.addf %39, %41 : vector<16x128xf32>
    %c0_21 = arith.constant 0 : index
    %c0_22 = arith.constant 0 : index
    %43 = vector.load %arg8[%c0_21, %c0_22] : memref<16x128xf32, #tpu.memory_space<vmem>>, vector<16x128xf32>
    tpu.vector_store %arg8[%c0_21, %c0_22], %42 {strides = array<i32>} : memref<16x128xf32, #tpu.memory_space<vmem>>, vector<16x128xf32>,
    return
  }
  func.func @transform_0(%arg0: i32) -> (i32, i32) {
    %c0_i32 = arith.constant 0 : i32
    %c0_i32_0 = arith.constant 0 : i32
    return %arg0, %c0_i32 : i32, i32
  }
  func.func @transform_1(%arg0: i32) -> (i32, i32) {
    %c0_i32 = arith.constant 0 : i32
    %c0_i32_0 = arith.constant 0 : i32
    %c0_i32_1 = arith.constant 0 : i32
    return %c0_i32, %c0_i32_0 : i32, i32
  }
  func.func @transform_2(%arg0: i32) -> (i32, i32) {
    %c0_i32 = arith.constant 0 : i32
    %c0_i32_0 = arith.constant 0 : i32
    %c0_i32_1 = arith.constant 0 : i32
    return %c0_i32, %c0_i32_0 : i32, i32
  }
  func.func @transform_3(%arg0: i32) -> (i32, i32) {
    %c0_i32 = arith.constant 0 : i32
    %c0_i32_0 = arith.constant 0 : i32
    %c0_i32_1 = arith.constant 0 : i32
    return %c0_i32, %c0_i32_0 : i32, i32
  }
  func.func @transform_4(%arg0: i32) -> (i32, i32) {
    %c0_i32 = arith.constant 0 : i32
    %c0_i32_0 = arith.constant 0 : i32
    %c0_i32_1 = arith.constant 0 : i32
    return %c0_i32, %c0_i32_0 : i32, i32
  }
  func.func @transform_5(%arg0: i32) -> (i32, i32) {
    %c0_i32 = arith.constant 0 : i32
    %c0_i32_0 = arith.constant 0 : i32
    %c0_i32_1 = arith.constant 0 : i32
    return %c0_i32, %c0_i32_0 : i32, i32
  }
  func.func @transform_6(%arg0: i32) -> (i32, i32) {
    %c0_i32 = arith.constant 0 : i32
    %c0_i32_0 = arith.constant 0 : i32
    %c0_i32_1 = arith.constant 0 : i32
    return %c0_i32, %c0_i32_0 : i32, i32
  }
  func.func @transform_7(%arg0: i32) -> (i32, i32) {
    %c0_i32 = arith.constant 0 : i32
    %c0_i32_0 = arith.constant 0 : i32
    return %arg0, %c0_i32 : i32, i32
  }
}

</mosaic_0001>

<llo_original>
// kernel: tpu_custom_call.1
$region0: #{tpu_custom_call.1}
  #allocation0 [shape = 'u32[]', space=smem, size = 0x4, offset = 0x4, fixed_abs, tag = 'smem constant byte address 0x4 - core index']
  #allocation1 [shape = 'u32[144,128]{1,0:T(1,128)}', space=vmem, size = 0x12000, scoped, tag = 'internal scratch']
  %s0 = inlined_call_operand.hbm [shape: bf16[16,32], index: 0, kind: input, shape index: {}]
  %s1 = inlined_call_operand.hbm [shape: f32[5,256], index: 1, kind: input, shape index: {}]
  %s2 = inlined_call_operand.hbm [shape: bf16[32,128], index: 2, kind: input, shape index: {}]
  %s3 = inlined_call_operand.hbm [shape: bf16[128,128], index: 3, kind: input, shape index: {}]
  %s4 = inlined_call_operand.hbm [shape: bf16[128,128], index: 4, kind: input, shape index: {}]
  %s5 = inlined_call_operand.hbm [shape: bf16[128,256], index: 5, kind: input, shape index: {}]
  %s6 = inlined_call_operand.hbm [shape: bf16[256,128], index: 6, kind: input, shape index: {}]
  %s7 = inlined_call_operand.hbm [shape: f32[16,128], index: 7, kind: output, shape index: {}]
  %s8 = sld [smem:[#allocation0]]
  $region66: #{tpu_custom_call.1} parent=0
    _
  %s10 = ssub.s32 1, %s8
  %s11 = scalar_select 0, %s10, %s8
  $region1: #{tpu_custom_call.1} parent=0
    #allocation2 [shape = 'u8[4096]{0}', space=vmem, size = 0x1000, scoped, tag = 'input window, operand 0, single buffered']
    #allocation3 [shape = 's32[1]{0}', space=sflag, size = 0x4, scoped, tag = 'scoped memory for tpu_custom_call.1']
    #allocation4 [shape = 's32[1]{0}', space=sflag, size = 0x4, scoped, tag = 'scoped memory for tpu_custom_call.1']
    #allocation5 [shape = 'u8[8192]{0}', space=vmem, size = 0x2000, scoped, tag = 'input window, operand 1, single buffered']
    #allocation6 [shape = 's32[1]{0}', space=sflag, size = 0x4, scoped, tag = 'scoped memory for tpu_custom_call.1']
    #allocation7 [shape = 'u8[8192]{0}', space=vmem, size = 0x2000, scoped, tag = 'input window, operand 2, single buffered']
    #allocation8 [shape = 'u8[32768]{0}', space=vmem, size = 0x8000, scoped, tag = 'input window, operand 3, single buffered']
    #allocation9 [shape = 's32[1]{0}', space=sflag, size = 0x4, scoped, tag = 'scoped memory for tpu_custom_call.1']
    #allocation10 [shape = 'u8[32768]{0}', space=vmem, size = 0x8000, scoped, tag = 'input window, operand 4, single buffered']
    #allocation11 [shape = 'u8[65536]{0}', space=vmem, size = 0x10000, scoped, tag = 'input window, operand 5, single buffered']
    #allocation12 [shape = 's32[1]{0}', space=sflag, size = 0x4, scoped, tag = 'scoped memory for tpu_custom_call.1']
    #allocation13 [shape = 'u8[65536]{0}', space=vmem, size = 0x10000, scoped, tag = 'input window, operand 6, single buffered']
    #allocation14 [shape = 'u8[8192]{0}', space=vmem, size = 0x2000, scoped, tag = 'output window, operand 0, single buffered']
    %12 = vsyncpa [#allocation3], 0
    %13 = vsyncpa [#allocation6], 0
    %14 = vsyncpa [#allocation9], 0
    %15 = vsyncpa [#allocation12], 0
    %16 = vsyncpa [#allocation4], 0
    // Predicated region
    $region2: #{tpu_custom_call.1} parent=1 // pred_check
      _
    $region3: #{tpu_custom_call.1} parent=1 // pred_check_branch
      %18 = sbr.rel (0) target = $region5
    $region4: #{tpu_custom_call.1} parent=1 // pred_region
      %s20 = ssub.s32 128, 128
      %21 = vsyncadd [#allocation3], %s20
      %s22 = sshll.u32 [#allocation2], 4
      %s23 = int_to_ptr.vmem [resolvable:$true] %s22
      %28 = dma.hbm_to_vmem [thread:$0]  %s0, 128, %s23, [#allocation3], 64, 64, 4
    $region5: #{tpu_custom_call.1} parent=1 // pred_fallthru
      _
    // Predicated region
    $region6: #{tpu_custom_call.1} parent=1 // pred_check
      _
    $region7: #{tpu_custom_call.1} parent=1 // pred_check_branch
      %30 = sbr.rel (0) target = $region9
    $region8: #{tpu_custom_call.1} parent=1 // pred_region
      %s32 = ssub.s32 256, 256
      %33 = vsyncadd [#allocation6], %s32
      %s35 = sshll.u32 [#allocation5], 4
      %s36 = int_to_ptr.vmem [resolvable:$true] %s35
      %38 = dma.hbm_to_vmem [thread:$0]  %s1, 256, %s36, [#allocation6]
    $region9: #{tpu_custom_call.1} parent=1 // pred_fallthru
      _
    // Predicated region
    $region10: #{tpu_custom_call.1} parent=1 // pred_check
      _
    $region11: #{tpu_custom_call.1} parent=1 // pred_check_branch
      %40 = sbr.rel (0) target = $region13
    $region12: #{tpu_custom_call.1} parent=1 // pred_region
      %s42 = ssub.s32 256, 256
      %43 = vsyncadd [#allocation6], %s42
      %s44 = sshll.u32 [#allocation7], 4
      %s45 = int_to_ptr.vmem [resolvable:$true] %s44
      %50 = dma.hbm_to_vmem [thread:$0]  %s2, 256, %s45, [#allocation6], 64, 64, 4
    $region13: #{tpu_custom_call.1} parent=1 // pred_fallthru
      _
    // Predicated region
    $region14: #{tpu_custom_call.1} parent=1 // pred_check
      _
    $region15: #{tpu_custom_call.1} parent=1 // pred_check_branch
      %52 = sbr.rel (0) target = $region17
    $region16: #{tpu_custom_call.1} parent=1 // pred_region
      %s54 = ssub.s32 1024, 1024
      %55 = vsyncadd [#allocation9], %s54
      %s56 = sshll.u32 [#allocation8], 4
      %s57 = int_to_ptr.vmem [resolvable:$true] %s56
      %62 = dma.hbm_to_vmem [thread:$0]  %s3, 1024, %s57, [#allocation9], 64, 64, 4
    $region17: #{tpu_custom_call.1} parent=1 // pred_fallthru
      _
    // Predicated region
    $region18: #{tpu_custom_call.1} parent=1 // pred_check
      _
    $region19: #{tpu_custom_call.1} parent=1 // pred_check_branch
      %64 = sbr.rel (0) target = $region21
    $region20: #{tpu_custom_call.1} parent=1 // pred_region
      %s66 = ssub.s32 1024, 1024
      %67 = vsyncadd [#allocation9], %s66
      %s68 = sshll.u32 [#allocation10], 4
      %s69 = int_to_ptr.vmem [resolvable:$true] %s68
      %74 = dma.hbm_to_vmem [thread:$0]  %s4, 1024, %s69, [#allocation9], 64, 64, 4
    $region21: #{tpu_custom_call.1} parent=1 // pred_fallthru
      _
    // Predicated region
    $region22: #{tpu_custom_call.1} parent=1 // pred_check
      _
    $region23: #{tpu_custom_call.1} parent=1 // pred_check_branch
      %76 = sbr.rel (0) target = $region25
    $region24: #{tpu_custom_call.1} parent=1 // pred_region
      %s78 = ssub.s32 2048, 2048
      %79 = vsyncadd [#allocation12], %s78
      %s80 = sshll.u32 [#allocation11], 4
      %s81 = int_to_ptr.vmem [resolvable:$true] %s80
      %86 = dma.hbm_to_vmem [thread:$0]  %s5, 2048, %s81, [#allocation12], 128, 128, 8
    $region25: #{tpu_custom_call.1} parent=1 // pred_fallthru
      _
    // Predicated region
    $region26: #{tpu_custom_call.1} parent=1 // pred_check
      _
    $region27: #{tpu_custom_call.1} parent=1 // pred_check_branch
      %88 = sbr.rel (0) target = $region29
    $region28: #{tpu_custom_call.1} parent=1 // pred_region
      %s90 = ssub.s32 2048, 2048
      %91 = vsyncadd [#allocation12], %s90
      %s92 = sshll.u32 [#allocation13], 4
      %s93 = int_to_ptr.vmem [resolvable:$true] %s92
      %98 = dma.hbm_to_vmem [thread:$0]  %s6, 2048, %s93, [#allocation12], 64, 64, 4
    $region29: #{tpu_custom_call.1} parent=1 // pred_fallthru
      _
    // Predicated region
    $region30: #{tpu_custom_call.1} parent=1 // pred_check
      _
    $region31: #{tpu_custom_call.1} parent=1 // pred_check_branch
      %100 = sbr.rel (0) target = $region33
    $region32: #{tpu_custom_call.1} parent=1 // pred_region
      %101 = dma.done [#allocation3], 128
    $region33: #{tpu_custom_call.1} parent=1 // pred_fallthru
      _
    // Predicated region
    $region34: #{tpu_custom_call.1} parent=1 // pred_check
      _
    $region35: #{tpu_custom_call.1} parent=1 // pred_check_branch
      %103 = sbr.rel (0) target = $region37
    $region36: #{tpu_custom_call.1} parent=1 // pred_region
      %104 = dma.done [#allocation6], 256
    $region37: #{tpu_custom_call.1} parent=1 // pred_fallthru
      _
    // Predicated region
    $region38: #{tpu_custom_call.1} parent=1 // pred_check
      _
    $region39: #{tpu_custom_call.1} parent=1 // pred_check_branch
      %106 = sbr.rel (0) target = $region41
    $region40: #{tpu_custom_call.1} parent=1 // pred_region
      %107 = dma.done [#allocation6], 256
    $region41: #{tpu_custom_call.1} parent=1 // pred_fallthru
      _
    // Predicated region
    $region42: #{tpu_custom_call.1} parent=1 // pred_check
      _
    $region43: #{tpu_custom_call.1} parent=1 // pred_check_branch
      %109 = sbr.rel (0) target = $region45
    $region44: #{tpu_custom_call.1} parent=1 // pred_region
      %110 = dma.done [#allocation9], 1024
    $region45: #{tpu_custom_call.1} parent=1 // pred_fallthru
      _
    // Predicated region
    $region46: #{tpu_custom_call.1} parent=1 // pred_check
      _
    $region47: #{tpu_custom_call.1} parent=1 // pred_check_branch
      %112 = sbr.rel (0) target = $region49
    $region48: #{tpu_custom_call.1} parent=1 // pred_region
      %113 = dma.done [#allocation9], 1024
    $region49: #{tpu_custom_call.1} parent=1 // pred_fallthru
      _
    // Predicated region
    $region50: #{tpu_custom_call.1} parent=1 // pred_check
      _
    $region51: #{tpu_custom_call.1} parent=1 // pred_check_branch
      %115 = sbr.rel (0) target = $region53
    $region52: #{tpu_custom_call.1} parent=1 // pred_region
      %116 = dma.done [#allocation12], 2048
    $region53: #{tpu_custom_call.1} parent=1 // pred_fallthru
      _
    // Predicated region
    $region54: #{tpu_custom_call.1} parent=1 // pred_check
      _
    $region55: #{tpu_custom_call.1} parent=1 // pred_check_branch
      %118 = sbr.rel (0) target = $region57
    $region56: #{tpu_custom_call.1} parent=1 // pred_region
      %119 = dma.done [#allocation12], 2048
    $region57: #{tpu_custom_call.1} parent=1 // pred_fallthru
      _
    %v121 = vld [vmem:[#allocation5] sm:$0x1f]
    %v122 = vld [vmem:[#allocation5 + $0x8] sm:$0x1f]
    %v123 = vld [vmem:[#allocation2] sm:$0xf]
    %v124 = vld [vmem:[#allocation2 + $0x4] sm:$0xf]
    %v125 = vld [vmem:[#allocation7] sm:$0xf]
    %v126 = vld [vmem:[#allocation7 + $0x4] sm:$0xf]
    %v127 = vld [vmem:[#allocation7 + $0x8] sm:$0xf]
    %v128 = vld [vmem:[#allocation7 + $0xc] sm:$0xf]
    %v129 = vlaneseq
    %v130 = vshrl.u32 %v129, 7
    %v131 = vsub.s32 0, %v130
    %v132 = vrot.slane %v121, %v131
    %v135 = vunpack.c.l.b16 %v123
    %v136 = vunpack.c.l.b16 %v124
    %v137 = vpack.c.b16 %v136, %v135
    %v142 = vunpack.c.l.b16 %v125
    %v143 = vunpack.c.l.b16 %v126
    %v144 = vunpack.c.l.b16 %v127
    %v145 = vunpack.c.l.b16 %v128
    %v146 = vpack.c.b16 %v143, %v142
    %v147 = vpack.c.b16 %v145, %v144
    %vm150 = vcmask 261120
    %v152 = vsel %vm150, %v137, 0
    %154 = vmatprep.subr.bf16.mxu0 0
    %155 = vmatpush1.bf16.msra.mxu0 %v146
    %156 = vmatprep.subr.bf16.mxu0 0
    %157 = vmatpush1.bf16.msra.mxu0 %v147
    %158 = vmatprep.subr.bf16.mxu0 0
    %159 = vmatpush1.bf16.msra.mxu0 0
    %160 = vmatprep.subr.bf16.mxu0 0
    %161 = vmatpush1.bf16.msra.mxu0 0
    %162 = vmatprep.subr.bf16.mxu0 0
    %163 = vmatpush1.bf16.msra.mxu0 0
    %164 = vmatprep.subr.bf16.mxu0 0
    %165 = vmatpush1.bf16.msra.mxu0 0
    %166 = vmatprep.subr.bf16.mxu0 0
    %167 = vmatpush1.bf16.msra.mxu0 0
    %168 = vmatprep.subr.bf16.mxu0 0
    %169 = vmatpush1.bf16.msra.mxu0 0
    %170 = vmatprep.subr.bf16.mxu0 0
    %171 = vmatpush1.bf16.msra.mxu0 0
    %172 = vmatprep.subr.bf16.mxu0 0
    %173 = vmatpush1.bf16.msra.mxu0 0
    %174 = vmatprep.subr.bf16.mxu0 0
    %175 = vmatpush1.bf16.msra.mxu0 0
    %176 = vmatprep.subr.bf16.mxu0 0
    %177 = vmatpush1.bf16.msra.mxu0 0
    %178 = vmatprep.subr.bf16.mxu0 0
    %179 = vmatpush1.bf16.msra.mxu0 0
    %180 = vmatprep.subr.bf16.mxu0 0
    %181 = vmatpush1.bf16.msra.mxu0 0
    %182 = vmatprep.subr.bf16.mxu0 0
    %183 = vmatpush1.bf16.msra.mxu0 0
    %184 = vmatprep.subr.bf16.mxu0 0
    %185 = vmatpush1.bf16.msra.mxu0 0
    %186 = vmatprep.mubr.bf16.mxu0 0
    %187 = vmatmul.mubr.bf16.gmra.mrb[0].mxu0 %v152
    %v188 = vpop.f32.mrb[0].mxu0
    %v189 = vadd.f32 %v132, %v188
    %v190 = vpop.f32.mrb[0].mxu0
    %v191 = vpop.f32.mrb[0].mxu0
    %v192 = vadd.f32 %v132, %v191
    %v193 = vpop.f32.mrb[0].mxu0
    %194 = vdwg.mxu0
    %v195 = vmul.f32 %v189, 0.2
    %v196 = vmul.f32 %v192, 0.2
    %v197 = vmax.f32 %v189, %v195
    %v198 = vmax.f32 %v192, %v196
    %v199 = vpack.c.bf16 %v198, %v197
    %v200 = vld [vmem:[#allocation8] sm:$0xf]
    %v201 = vld [vmem:[#allocation8 + $0x4] sm:$0xf]
    %v202 = vld [vmem:[#allocation8 + $0x8] sm:$0xf]
    %v203 = vld [vmem:[#allocation8 + $0xc] sm:$0xf]
    %v204 = vld [vmem:[#allocation8 + $0x10] sm:$0xf]
    %v205 = vld [vmem:[#allocation8 + $0x14] sm:$0xf]
    %v206 = vld [vmem:[#allocation8 + $0x18] sm:$0xf]
    %v207 = vld [vmem:[#allocation8 + $0x1c] sm:$0xf]
    %v208 = vld [vmem:[#allocation8 + $0x20] sm:$0xf]
    %v209 = vld [vmem:[#allocation8 + $0x24] sm:$0xf]
    %v210 = vld [vmem:[#allocation8 + $0x28] sm:$0xf]
    %v211 = vld [vmem:[#allocation8 + $0x2c] sm:$0xf]
    %v212 = vld [vmem:[#allocation8 + $0x30] sm:$0xf]
    %v213 = vld [vmem:[#allocation8 + $0x34] sm:$0xf]
    %v214 = vld [vmem:[#allocation8 + $0x38] sm:$0xf]
    %v215 = vld [vmem:[#allocation8 + $0x3c] sm:$0xf]
    %v216 = vlaneseq
    %v217 = vshrl.u32 %v216, 7
    %v218 = vsub.s32 1, %v217
    %v219 = vrot.slane %v121, %v218
    %v236 = vunpack.c.l.b16 %v200
    %v237 = vunpack.c.l.b16 %v201
    %v238 = vunpack.c.l.b16 %v202
    %v239 = vunpack.c.l.b16 %v203
    %v240 = vunpack.c.l.b16 %v204
    %v241 = vunpack.c.l.b16 %v205
    %v242 = vunpack.c.l.b16 %v206
    %v243 = vunpack.c.l.b16 %v207
    %v244 = vunpack.c.l.b16 %v208
    %v245 = vunpack.c.l.b16 %v209
    %v246 = vunpack.c.l.b16 %v210
    %v247 = vunpack.c.l.b16 %v211
    %v248 = vunpack.c.l.b16 %v212
    %v249 = vunpack.c.l.b16 %v213
    %v250 = vunpack.c.l.b16 %v214
    %v251 = vunpack.c.l.b16 %v215
    %v252 = vpack.c.b16 %v237, %v236
    %v253 = vpack.c.b16 %v239, %v238
    %v254 = vpack.c.b16 %v241, %v240
    %v255 = vpack.c.b16 %v243, %v242
    %v256 = vpack.c.b16 %v245, %v244
    %v257 = vpack.c.b16 %v247, %v246
    %v258 = vpack.c.b16 %v249, %v248
    %v259 = vpack.c.b16 %v251, %v250
    %268 = vmatprep.subr.bf16.mxu0 0
    %269 = vmatpush1.bf16.msra.mxu0 %v252
    %270 = vmatprep.subr.bf16.mxu0 0
    %271 = vmatpush1.bf16.msra.mxu0 %v253
    %272 = vmatprep.subr.bf16.mxu0 0
    %273 = vmatpush1.bf16.msra.mxu0 %v254
    %274 = vmatprep.subr.bf16.mxu0 0
    %275 = vmatpush1.bf16.msra.mxu0 %v255
    %276 = vmatprep.subr.bf16.mxu0 0
    %277 = vmatpush1.bf16.msra.mxu0 %v256
    %278 = vmatprep.subr.bf16.mxu0 0
    %279 = vmatpush1.bf16.msra.mxu0 %v257
    %280 = vmatprep.subr.bf16.mxu0 0
    %281 = vmatpush1.bf16.msra.mxu0 %v258
    %282 = vmatprep.subr.bf16.mxu0 0
    %283 = vmatpush1.bf16.msra.mxu0 %v259
    %284 = vmatprep.subr.bf16.mxu0 0
    %285 = vmatpush1.bf16.msra.mxu0 0
    %286 = vmatprep.subr.bf16.mxu0 0
    %287 = vmatpush1.bf16.msra.mxu0 0
    %288 = vmatprep.subr.bf16.mxu0 0
    %289 = vmatpush1.bf16.msra.mxu0 0
    %290 = vmatprep.subr.bf16.mxu0 0
    %291 = vmatpush1.bf16.msra.mxu0 0
    %292 = vmatprep.subr.bf16.mxu0 0
    %293 = vmatpush1.bf16.msra.mxu0 0
    %294 = vmatprep.subr.bf16.mxu0 0
    %295 = vmatpush1.bf16.msra.mxu0 0
    %296 = vmatprep.subr.bf16.mxu0 0
    %297 = vmatpush1.bf16.msra.mxu0 0
    %298 = vmatprep.subr.bf16.mxu0 0
    %299 = vmatpush1.bf16.msra.mxu0 0
    %300 = vmatprep.mubr.bf16.mxu0 0
    %301 = vmatmul.mubr.bf16.gmra.mrb[0].mxu0 %v199
    %v302 = vpop.f32.mrb[0].mxu0
    %v303 = vadd.f32 %v219, %v302
    %v304 = vpop.f32.mrb[0].mxu0
    %v305 = vpop.f32.mrb[0].mxu0
    %v306 = vadd.f32 %v219, %v305
    %v307 = vpop.f32.mrb[0].mxu0
    %308 = vdwg.mxu0
    %v309 = vmul.f32 %v303, 0.2
    %v310 = vmul.f32 %v306, 0.2
    %v311 = vmax.f32 %v303, %v309
    %v312 = vmax.f32 %v306, %v310
    %v313 = vpack.c.bf16 %v312, %v311
    %v314 = vld [vmem:[#allocation10] sm:$0xf]
    %v315 = vld [vmem:[#allocation10 + $0x4] sm:$0xf]
    %v316 = vld [vmem:[#allocation10 + $0x8] sm:$0xf]
    %v317 = vld [vmem:[#allocation10 + $0xc] sm:$0xf]
    %v318 = vld [vmem:[#allocation10 + $0x10] sm:$0xf]
    %v319 = vld [vmem:[#allocation10 + $0x14] sm:$0xf]
    %v320 = vld [vmem:[#allocation10 + $0x18] sm:$0xf]
    %v321 = vld [vmem:[#allocation10 + $0x1c] sm:$0xf]
    %v322 = vld [vmem:[#allocation10 + $0x20] sm:$0xf]
    %v323 = vld [vmem:[#allocation10 + $0x24] sm:$0xf]
    %v324 = vld [vmem:[#allocation10 + $0x28] sm:$0xf]
    %v325 = vld [vmem:[#allocation10 + $0x2c] sm:$0xf]
    %v326 = vld [vmem:[#allocation10 + $0x30] sm:$0xf]
    %v327 = vld [vmem:[#allocation10 + $0x34] sm:$0xf]
    %v328 = vld [vmem:[#allocation10 + $0x38] sm:$0xf]
    %v329 = vld [vmem:[#allocation10 + $0x3c] sm:$0xf]
    %v330 = vlaneseq
    %v331 = vshrl.u32 %v330, 7
    %v332 = vsub.s32 2, %v331
    %v333 = vrot.slane %v121, %v332
    %v350 = vunpack.c.l.b16 %v314
    %v351 = vunpack.c.l.b16 %v315
    %v352 = vunpack.c.l.b16 %v316
    %v353 = vunpack.c.l.b16 %v317
    %v354 = vunpack.c.l.b16 %v318
    %v355 = vunpack.c.l.b16 %v319
    %v356 = vunpack.c.l.b16 %v320
    %v357 = vunpack.c.l.b16 %v321
    %v358 = vunpack.c.l.b16 %v322
    %v359 = vunpack.c.l.b16 %v323
    %v360 = vunpack.c.l.b16 %v324
    %v361 = vunpack.c.l.b16 %v325
    %v362 = vunpack.c.l.b16 %v326
    %v363 = vunpack.c.l.b16 %v327
    %v364 = vunpack.c.l.b16 %v328
    %v365 = vunpack.c.l.b16 %v329
    %v366 = vpack.c.b16 %v351, %v350
    %v367 = vpack.c.b16 %v353, %v352
    %v368 = vpack.c.b16 %v355, %v354
    %v369 = vpack.c.b16 %v357, %v356
    %v370 = vpack.c.b16 %v359, %v358
    %v371 = vpack.c.b16 %v361, %v360
    %v372 = vpack.c.b16 %v363, %v362
    %v373 = vpack.c.b16 %v365, %v364
    %382 = vmatprep.subr.bf16.mxu0 0
    %383 = vmatpush1.bf16.msra.mxu0 %v366
    %384 = vmatprep.subr.bf16.mxu0 0
    %385 = vmatpush1.bf16.msra.mxu0 %v367
    %386 = vmatprep.subr.bf16.mxu0 0
    %387 = vmatpush1.bf16.msra.mxu0 %v368
    %388 = vmatprep.subr.bf16.mxu0 0
    %389 = vmatpush1.bf16.msra.mxu0 %v369
    %390 = vmatprep.subr.bf16.mxu0 0
    %391 = vmatpush1.bf16.msra.mxu0 %v370
    %392 = vmatprep.subr.bf16.mxu0 0
    %393 = vmatpush1.bf16.msra.mxu0 %v371
    %394 = vmatprep.subr.bf16.mxu0 0
    %395 = vmatpush1.bf16.msra.mxu0 %v372
    %396 = vmatprep.subr.bf16.mxu0 0
    %397 = vmatpush1.bf16.msra.mxu0 %v373
    %398 = vmatprep.subr.bf16.mxu0 0
    %399 = vmatpush1.bf16.msra.mxu0 0
    %400 = vmatprep.subr.bf16.mxu0 0
    %401 = vmatpush1.bf16.msra.mxu0 0
    %402 = vmatprep.subr.bf16.mxu0 0
    %403 = vmatpush1.bf16.msra.mxu0 0
    %404 = vmatprep.subr.bf16.mxu0 0
    %405 = vmatpush1.bf16.msra.mxu0 0
    %406 = vmatprep.subr.bf16.mxu0 0
    %407 = vmatpush1.bf16.msra.mxu0 0
    %408 = vmatprep.subr.bf16.mxu0 0
    %409 = vmatpush1.bf16.msra.mxu0 0
    %410 = vmatprep.subr.bf16.mxu0 0
    %411 = vmatpush1.bf16.msra.mxu0 0
    %412 = vmatprep.subr.bf16.mxu0 0
    %413 = vmatpush1.bf16.msra.mxu0 0
    %414 = vmatprep.mubr.bf16.mxu0 0
    %415 = vmatmul.mubr.bf16.gmra.mrb[0].mxu0 %v313
    %v416 = vpop.f32.mrb[0].mxu0
    %v417 = vadd.f32 %v333, %v416
    %v418 = vpop.f32.mrb[0].mxu0
    %v419 = vpop.f32.mrb[0].mxu0
    %v420 = vadd.f32 %v333, %v419
    %v421 = vpop.f32.mrb[0].mxu0
    %422 = vdwg.mxu0
    %v423 = vmul.f32 %v417, 0.2
    %v424 = vmul.f32 %v420, 0.2
    %v425 = vmax.f32 %v417, %v423
    %v426 = vmax.f32 %v420, %v424
    %v427 = vpack.c.bf16 %v426, %v425
    %v428 = vld [vmem:[#allocation11] sm:$0xff]
    %v429 = vld [vmem:[#allocation11 + $0x8] sm:$0xff]
    %v430 = vld [vmem:[#allocation11 + $0x10] sm:$0xff]
    %v431 = vld [vmem:[#allocation11 + $0x18] sm:$0xff]
    %v432 = vld [vmem:[#allocation11 + $0x20] sm:$0xff]
    %v433 = vld [vmem:[#allocation11 + $0x28] sm:$0xff]
    %v434 = vld [vmem:[#allocation11 + $0x30] sm:$0xff]
    %v435 = vld [vmem:[#allocation11 + $0x38] sm:$0xff]
    %v436 = vld [vmem:[#allocation11 + $0x40] sm:$0xff]
    %v437 = vld [vmem:[#allocation11 + $0x48] sm:$0xff]
    %v438 = vld [vmem:[#allocation11 + $0x50] sm:$0xff]
    %v439 = vld [vmem:[#allocation11 + $0x58] sm:$0xff]
    %v440 = vld [vmem:[#allocation11 + $0x60] sm:$0xff]
    %v441 = vld [vmem:[#allocation11 + $0x68] sm:$0xff]
    %v442 = vld [vmem:[#allocation11 + $0x70] sm:$0xff]
    %v443 = vld [vmem:[#allocation11 + $0x78] sm:$0xff]
    %v444 = vlaneseq
    %v445 = vshrl.u32 %v444, 7
    %v446 = vsub.s32 3, %v445
    %v447 = vrot.slane %v121, %v446
    %v448 = vlaneseq
    %v449 = vshrl.u32 %v448, 7
    %v450 = vsub.s32 3, %v449
    %v451 = vrot.slane %v122, %v450
    %v468 = vunpack.c.l.b16 %v428
    %v469 = vunpack.c.h.b16 %v428
    %v470 = vunpack.c.l.b16 %v429
    %v471 = vunpack.c.h.b16 %v429
    %v472 = vunpack.c.l.b16 %v430
    %v473 = vunpack.c.h.b16 %v430
    %v474 = vunpack.c.l.b16 %v431
    %v475 = vunpack.c.h.b16 %v431
    %v476 = vunpack.c.l.b16 %v432
    %v477 = vunpack.c.h.b16 %v432
    %v478 = vunpack.c.l.b16 %v433
    %v479 = vunpack.c.h.b16 %v433
    %v480 = vunpack.c.l.b16 %v434
    %v481 = vunpack.c.h.b16 %v434
    %v482 = vunpack.c.l.b16 %v435
    %v483 = vunpack.c.h.b16 %v435
    %v484 = vunpack.c.l.b16 %v436
    %v485 = vunpack.c.h.b16 %v436
    %v486 = vunpack.c.l.b16 %v437
    %v487 = vunpack.c.h.b16 %v437
    %v488 = vunpack.c.l.b16 %v438
    %v489 = vunpack.c.h.b16 %v438
    %v490 = vunpack.c.l.b16 %v439
    %v491 = vunpack.c.h.b16 %v439
    %v492 = vunpack.c.l.b16 %v440
    %v493 = vunpack.c.h.b16 %v440
    %v494 = vunpack.c.l.b16 %v441
    %v495 = vunpack.c.h.b16 %v441
    %v496 = vunpack.c.l.b16 %v442
    %v497 = vunpack.c.h.b16 %v442
    %v498 = vunpack.c.l.b16 %v443
    %v499 = vunpack.c.h.b16 %v443
    %v500 = vpack.c.b16 %v470, %v468
    %v501 = vpack.c.b16 %v471, %v469
    %v502 = vpack.c.b16 %v474, %v472
    %v503 = vpack.c.b16 %v475, %v473
    %v504 = vpack.c.b16 %v478, %v476
    %v505 = vpack.c.b16 %v479, %v477
    %v506 = vpack.c.b16 %v482, %v480
    %v507 = vpack.c.b16 %v483, %v481
    %v508 = vpack.c.b16 %v486, %v484
    %v509 = vpack.c.b16 %v487, %v485
    %v510 = vpack.c.b16 %v490, %v488
    %v511 = vpack.c.b16 %v491, %v489
    %v512 = vpack.c.b16 %v494, %v492
    %v513 = vpack.c.b16 %v495, %v493
    %v514 = vpack.c.b16 %v498, %v496
    %v515 = vpack.c.b16 %v499, %v497
    %532 = vmatprep.subr.bf16.mxu0 %v501
    %533 = vmatpush1.bf16.msra.mxu0 %v500
    %534 = vmatprep.subr.bf16.mxu0 %v503
    %535 = vmatpush1.bf16.msra.mxu0 %v502
    %536 = vmatprep.subr.bf16.mxu0 %v505
    %537 = vmatpush1.bf16.msra.mxu0 %v504
    %538 = vmatprep.subr.bf16.mxu0 %v507
    %539 = vmatpush1.bf16.msra.mxu0 %v506
    %540 = vmatprep.subr.bf16.mxu0 %v509
    %541 = vmatpush1.bf16.msra.mxu0 %v508
    %542 = vmatprep.subr.bf16.mxu0 %v511
    %543 = vmatpush1.bf16.msra.mxu0 %v510
    %544 = vmatprep.subr.bf16.mxu0 %v513
    %545 = vmatpush1.bf16.msra.mxu0 %v512
    %546 = vmatprep.subr.bf16.mxu0 %v515
    %547 = vmatpush1.bf16.msra.mxu0 %v514
    %548 = vmatprep.subr.bf16.mxu0 0
    %549 = vmatpush1.bf16.msra.mxu0 0
    %550 = vmatprep.subr.bf16.mxu0 0
    %551 = vmatpush1.bf16.msra.mxu0 0
    %552 = vmatprep.subr.bf16.mxu0 0
    %553 = vmatpush1.bf16.msra.mxu0 0
    %554 = vmatprep.subr.bf16.mxu0 0
    %555 = vmatpush1.bf16.msra.mxu0 0
    %556 = vmatprep.subr.bf16.mxu0 0
    %557 = vmatpush1.bf16.msra.mxu0 0
    %558 = vmatprep.subr.bf16.mxu0 0
    %559 = vmatpush1.bf16.msra.mxu0 0
    %560 = vmatprep.subr.bf16.mxu0 0
    %561 = vmatpush1.bf16.msra.mxu0 0
    %562 = vmatprep.subr.bf16.mxu0 0
    %563 = vmatpush1.bf16.msra.mxu0 0
    %564 = vmatprep.mubr.bf16.mxu0 0
    %565 = vmatmul.mubr.bf16.gmra.mrb[0].mxu0 %v427
    %v566 = vpop.f32.mrb[0].mxu0
    %v567 = vadd.f32 %v447, %v566
    %v568 = vpop.f32.mrb[0].mxu0
    %v569 = vadd.f32 %v451, %v568
    %v570 = vpop.f32.mrb[0].mxu0
    %v571 = vadd.f32 %v447, %v570
    %v572 = vpop.f32.mrb[0].mxu0
    %v573 = vadd.f32 %v451, %v572
    %574 = vdwg.mxu0
    %v575 = vmul.f32 %v567, 0.2
    %v576 = vmul.f32 %v569, 0.2
    %v577 = vmul.f32 %v571, 0.2
    %v578 = vmul.f32 %v573, 0.2
    %v579 = vmax.f32 %v567, %v575
    %v580 = vmax.f32 %v569, %v576
    %v581 = vmax.f32 %v571, %v577
    %v582 = vmax.f32 %v573, %v578
    %v583 = vpack.c.bf16 %v581, %v579
    %v584 = vpack.c.bf16 %v582, %v580
    %v585 = vld [vmem:[#allocation13] sm:$0xf]
    %v586 = vld [vmem:[#allocation13 + $0x4] sm:$0xf]
    %v587 = vld [vmem:[#allocation13 + $0x8] sm:$0xf]
    %v588 = vld [vmem:[#allocation13 + $0xc] sm:$0xf]
    %v589 = vld [vmem:[#allocation13 + $0x10] sm:$0xf]
    %v590 = vld [vmem:[#allocation13 + $0x14] sm:$0xf]
    %v591 = vld [vmem:[#allocation13 + $0x18] sm:$0xf]
    %v592 = vld [vmem:[#allocation13 + $0x1c] sm:$0xf]
    %v593 = vld [vmem:[#allocation13 + $0x20] sm:$0xf]
    %v594 = vld [vmem:[#allocation13 + $0x24] sm:$0xf]
    %v595 = vld [vmem:[#allocation13 + $0x28] sm:$0xf]
    %v596 = vld [vmem:[#allocation13 + $0x2c] sm:$0xf]
    %v597 = vld [vmem:[#allocation13 + $0x30] sm:$0xf]
    %v598 = vld [vmem:[#allocation13 + $0x34] sm:$0xf]
    %v599 = vld [vmem:[#allocation13 + $0x38] sm:$0xf]
    %v600 = vld [vmem:[#allocation13 + $0x3c] sm:$0xf]
    %v601 = vld [vmem:[#allocation13 + $0x40] sm:$0xf]
    %v602 = vld [vmem:[#allocation13 + $0x44] sm:$0xf]
    %v603 = vld [vmem:[#allocation13 + $0x48] sm:$0xf]
    %v604 = vld [vmem:[#allocation13 + $0x4c] sm:$0xf]
    %v605 = vld [vmem:[#allocation13 + $0x50] sm:$0xf]
    %v606 = vld [vmem:[#allocation13 + $0x54] sm:$0xf]
    %v607 = vld [vmem:[#allocation13 + $0x58] sm:$0xf]
    %v608 = vld [vmem:[#allocation13 + $0x5c] sm:$0xf]
    %v609 = vld [vmem:[#allocation13 + $0x60] sm:$0xf]
    %v610 = vld [vmem:[#allocation13 + $0x64] sm:$0xf]
    %v611 = vld [vmem:[#allocation13 + $0x68] sm:$0xf]
    %v612 = vld [vmem:[#allocation13 + $0x6c] sm:$0xf]
    %v613 = vld [vmem:[#allocation13 + $0x70] sm:$0xf]
    %v614 = vld [vmem:[#allocation13 + $0x74] sm:$0xf]
    %v615 = vld [vmem:[#allocation13 + $0x78] sm:$0xf]
    %v616 = vld [vmem:[#allocation13 + $0x7c] sm:$0xf]
    %v617 = vlaneseq
    %v618 = vshrl.u32 %v617, 7
    %v619 = vsub.s32 4, %v618
    %v620 = vrot.slane %v121, %v619
    %v653 = vunpack.c.l.b16 %v585
    %v654 = vunpack.c.l.b16 %v586
    %v655 = vunpack.c.l.b16 %v587
    %v656 = vunpack.c.l.b16 %v588
    %v657 = vunpack.c.l.b16 %v589
    %v658 = vunpack.c.l.b16 %v590
    %v659 = vunpack.c.l.b16 %v591
    %v660 = vunpack.c.l.b16 %v592
    %v661 = vunpack.c.l.b16 %v593
    %v662 = vunpack.c.l.b16 %v594
    %v663 = vunpack.c.l.b16 %v595
    %v664 = vunpack.c.l.b16 %v596
    %v665 = vunpack.c.l.b16 %v597
    %v666 = vunpack.c.l.b16 %v598
    %v667 = vunpack.c.l.b16 %v599
    %v668 = vunpack.c.l.b16 %v600
    %v669 = vunpack.c.l.b16 %v601
    %v670 = vunpack.c.l.b16 %v602
    %v671 = vunpack.c.l.b16 %v603
    %v672 = vunpack.c.l.b16 %v604
    %v673 = vunpack.c.l.b16 %v605
    %v674 = vunpack.c.l.b16 %v606
    %v675 = vunpack.c.l.b16 %v607
    %v676 = vunpack.c.l.b16 %v608
    %v677 = vunpack.c.l.b16 %v609
    %v678 = vunpack.c.l.b16 %v610
    %v679 = vunpack.c.l.b16 %v611
    %v680 = vunpack.c.l.b16 %v612
    %v681 = vunpack.c.l.b16 %v613
    %v682 = vunpack.c.l.b16 %v614
    %v683 = vunpack.c.l.b16 %v615
    %v684 = vunpack.c.l.b16 %v616
    %v685 = vpack.c.b16 %v654, %v653
    %v686 = vpack.c.b16 %v656, %v655
    %v687 = vpack.c.b16 %v658, %v657
    %v688 = vpack.c.b16 %v660, %v659
    %v689 = vpack.c.b16 %v662, %v661
    %v690 = vpack.c.b16 %v664, %v663
    %v691 = vpack.c.b16 %v666, %v665
    %v692 = vpack.c.b16 %v668, %v667
    %v693 = vpack.c.b16 %v670, %v669
    %v694 = vpack.c.b16 %v672, %v671
    %v695 = vpack.c.b16 %v674, %v673
    %v696 = vpack.c.b16 %v676, %v675
    %v697 = vpack.c.b16 %v678, %v677
    %v698 = vpack.c.b16 %v680, %v679
    %v699 = vpack.c.b16 %v682, %v681
    %v700 = vpack.c.b16 %v684, %v683
    %717 = vmatprep.subr.bf16.mxu0 0
    %718 = vmatpush1.bf16.msra.mxu0 %v685
    %719 = vmatprep.subr.bf16.mxu0 0
    %720 = vmatpush1.bf16.msra.mxu0 %v686
    %721 = vmatprep.subr.bf16.mxu0 0
    %722 = vmatpush1.bf16.msra.mxu0 %v687
    %723 = vmatprep.subr.bf16.mxu0 0
    %724 = vmatpush1.bf16.msra.mxu0 %v688
    %725 = vmatprep.subr.bf16.mxu0 0
    %726 = vmatpush1.bf16.msra.mxu0 %v689
    %727 = vmatprep.subr.bf16.mxu0 0
    %728 = vmatpush1.bf16.msra.mxu0 %v690
    %729 = vmatprep.subr.bf16.mxu0 0
    %730 = vmatpush1.bf16.msra.mxu0 %v691
    %731 = vmatprep.subr.bf16.mxu0 0
    %732 = vmatpush1.bf16.msra.mxu0 %v692
    %733 = vmatprep.subr.bf16.mxu0 0
    %734 = vmatpush1.bf16.msra.mxu0 %v693
    %735 = vmatprep.subr.bf16.mxu0 0
    %736 = vmatpush1.bf16.msra.mxu0 %v694
    %737 = vmatprep.subr.bf16.mxu0 0
    %738 = vmatpush1.bf16.msra.mxu0 %v695
    %739 = vmatprep.subr.bf16.mxu0 0
    %740 = vmatpush1.bf16.msra.mxu0 %v696
    %741 = vmatprep.subr.bf16.mxu0 0
    %742 = vmatpush1.bf16.msra.mxu0 %v697
    %743 = vmatprep.subr.bf16.mxu0 0
    %744 = vmatpush1.bf16.msra.mxu0 %v698
    %745 = vmatprep.subr.bf16.mxu0 0
    %746 = vmatpush1.bf16.msra.mxu0 %v699
    %747 = vmatprep.subr.bf16.mxu0 0
    %748 = vmatpush1.bf16.msra.mxu0 %v700
    %749 = vmatprep.mubr.bf16.mxu0 %v584
    %750 = vmatmul.mubr.bf16.gmra.mrb[0].mxu0 %v583
    %v751 = vpop.f32.mrb[0].mxu0
    %v752 = vadd.f32 %v620, %v751
    %v753 = vpop.f32.mrb[0].mxu0
    %v754 = vpop.f32.mrb[0].mxu0
    %v755 = vadd.f32 %v620, %v754
    %v756 = vpop.f32.mrb[0].mxu0
    %757 = vdwg.mxu0
    %758 = vst [vmem:[#allocation14] sm:$0xff] %v752
    %759 = vst [vmem:[#allocation14 + $0x8] sm:$0xff] %v755
    // Predicated region
    $region58: #{tpu_custom_call.1} parent=1 // pred_check
      _
    $region59: #{tpu_custom_call.1} parent=1 // pred_check_branch
      %761 = sbr.rel (0) target = $region61
    $region60: #{tpu_custom_call.1} parent=1 // pred_region
      %s763 = ssub.s32 256, 256
      %764 = vsyncadd [#allocation4], %s763
      %s765 = sshll.u32 [#allocation14], 4
      %s766 = int_to_ptr.vmem [resolvable:$true] %s765
      %771 = dma.vmem_to_hbm [thread:$0]  %s766, 256, %s7, [#allocation4], 128, 128, 8
    $region61: #{tpu_custom_call.1} parent=1 // pred_fallthru
      _
    // Predicated region
    $region62: #{tpu_custom_call.1} parent=1 // pred_check
      _
    $region63: #{tpu_custom_call.1} parent=1 // pred_check_branch
      %773 = sbr.rel (0) target = $region65
    $region64: #{tpu_custom_call.1} parent=1 // pred_region
      %774 = dma.done [#allocation4], 256
    $region65: #{tpu_custom_call.1} parent=1 // pred_fallthru
      _
    %775 = vsyncpa [#allocation3], 1
    %776 = vsyncpa [#allocation6], 1
    %777 = vsyncpa [#allocation9], 1
    %778 = vsyncpa [#allocation12], 1
    %779 = vsyncpa [#allocation4], 1

// kernel: tpu_custom_call.1
$region0: #{tpu_custom_call.1}
  #allocation0 [shape = 'u32[]', space=smem, size = 0x4, offset = 0x4, fixed_abs, tag = 'smem constant byte address 0x4 - core index']
  #allocation1 [shape = 'u32[144,128]{1,0:T(1,128)}', space=vmem, size = 0x12000, scoped, tag = 'internal scratch']
  %s0 = inlined_call_operand.hbm [shape: bf16[16,32], index: 0, kind: input, shape index: {}]
  %s1 = inlined_call_operand.hbm [shape: f32[5,256], index: 1, kind: input, shape index: {}]
  %s2 = inlined_call_operand.hbm [shape: bf16[32,128], index: 2, kind: input, shape index: {}]
  %s3 = inlined_call_operand.hbm [shape: bf16[128,128], index: 3, kind: input, shape index: {}]
  %s4 = inlined_call_operand.hbm [shape: bf16[128,128], index: 4, kind: input, shape index: {}]
  %s5 = inlined_call_operand.hbm [shape: bf16[128,256], index: 5, kind: input, shape index: {}]
  %s6 = inlined_call_operand.hbm [shape: bf16[256,128], index: 6, kind: input, shape index: {}]
  %s7 = inlined_call_operand.hbm [shape: f32[16,128], index: 7, kind: output, shape index: {}]
  %s8 = sld [smem:[#allocation0]]
  $region66: #{tpu_custom_call.1} parent=0
    _
  %s10 = ssub.s32 1, %s8
  %s11 = scalar_select 0, %s10, %s8
  $region1: #{tpu_custom_call.1} parent=0
    #allocation2 [shape = 'u8[4096]{0}', space=vmem, size = 0x1000, scoped, tag = 'input window, operand 0, single buffered']
    #allocation3 [shape = 's32[1]{0}', space=sflag, size = 0x4, scoped, tag = 'scoped memory for tpu_custom_call.1']
    #allocation4 [shape = 's32[1]{0}', space=sflag, size = 0x4, scoped, tag = 'scoped memory for tpu_custom_call.1']
    #allocation5 [shape = 'u8[8192]{0}', space=vmem, size = 0x2000, scoped, tag = 'input window, operand 1, single buffered']
    #allocation6 [shape = 's32[1]{0}', space=sflag, size = 0x4, scoped, tag = 'scoped memory for tpu_custom_call.1']
    #allocation7 [shape = 'u8[8192]{0}', space=vmem, size = 0x2000, scoped, tag = 'input window, operand 2, single buffered']
    #allocation8 [shape = 'u8[32768]{0}', space=vmem, size = 0x8000, scoped, tag = 'input window, operand 3, single buffered']
    #allocation9 [shape = 's32[1]{0}', space=sflag, size = 0x4, scoped, tag = 'scoped memory for tpu_custom_call.1']
    #allocation10 [shape = 'u8[32768]{0}', space=vmem, size = 0x8000, scoped, tag = 'input window, operand 4, single buffered']
    #allocation11 [shape = 'u8[65536]{0}', space=vmem, size = 0x10000, scoped, tag = 'input window, operand 5, single buffered']
    #allocation12 [shape = 's32[1]{0}', space=sflag, size = 0x4, scoped, tag = 'scoped memory for tpu_custom_call.1']
    #allocation13 [shape = 'u8[65536]{0}', space=vmem, size = 0x10000, scoped, tag = 'input window, operand 6, single buffered']
    #allocation14 [shape = 'u8[8192]{0}', space=vmem, size = 0x2000, scoped, tag = 'output window, operand 0, single buffered']
    %12 = vsyncpa [#allocation3], 0
    %13 = vsyncpa [#allocation6], 0
    %14 = vsyncpa [#allocation9], 0
    %15 = vsyncpa [#allocation12], 0
    %16 = vsyncpa [#allocation4], 0
    // Predicated region
    $region2: #{tpu_custom_call.1} parent=1 // pred_check
      _
    $region3: #{tpu_custom_call.1} parent=1 // pred_check_branch
      %18 = sbr.rel (0) target = $region5
    $region4: #{tpu_custom_call.1} parent=1 // pred_region
      %s20 = ssub.s32 128, 128
      %21 = vsyncadd [#allocation3], %s20
      %s22 = sshll.u32 [#allocation2], 4
      %s23 = int_to_ptr.vmem [resolvable:$true] %s22
      %28 = dma.hbm_to_vmem [thread:$0]  %s0, 128, %s23, [#allocation3], 64, 64, 4
    $region5: #{tpu_custom_call.1} parent=1 // pred_fallthru
      _
    // Predicated region
    $region6: #{tpu_custom_call.1} parent=1 // pred_check
      _
    $region7: #{tpu_custom_call.1} parent=1 // pred_check_branch
      %30 = sbr.rel (0) target = $region9
    $region8: #{tpu_custom_call.1} parent=1 // pred_region
      %s32 = ssub.s32 256, 256
      %33 = vsyncadd [#allocation6], %s32
      %s35 = sshll.u32 [#allocation5], 4
      %s36 = int_to_ptr.vmem [resolvable:$true] %s35
      %38 = dma.hbm_to_vmem [thread:$0]  %s1, 256, %s36, [#allocation6]
    $region9: #{tpu_custom_call.1} parent=1 // pred_fallthru
      _
    // Predicated region
    $region10: #{tpu_custom_call.1} parent=1 // pred_check
      _
    $region11: #{tpu_custom_call.1} parent=1 // pred_check_branch
      %40 = sbr.rel (0) target = $region13
    $region12: #{tpu_custom_call.1} parent=1 // pred_region
      %s42 = ssub.s32 256, 256
      %43 = vsyncadd [#allocation6], %s42
      %s44 = sshll.u32 [#allocation7], 4
      %s45 = int_to_ptr.vmem [resolvable:$true] %s44
      %50 = dma.hbm_to_vmem [thread:$0]  %s2, 256, %s45, [#allocation6], 64, 64, 4
    $region13: #{tpu_custom_call.1} parent=1 // pred_fallthru
      _
    // Predicated region
    $region14: #{tpu_custom_call.1} parent=1 // pred_check
      _
    $region15: #{tpu_custom_call.1} parent=1 // pred_check_branch
      %52 = sbr.rel (0) target = $region17
    $region16: #{tpu_custom_call.1} parent=1 // pred_region
      %s54 = ssub.s32 1024, 1024
      %55 = vsyncadd [#allocation9], %s54
      %s56 = sshll.u32 [#allocation8], 4
      %s57 = int_to_ptr.vmem [resolvable:$true] %s56
      %62 = dma.hbm_to_vmem [thread:$0]  %s3, 1024, %s57, [#allocation9], 64, 64, 4
    $region17: #{tpu_custom_call.1} parent=1 // pred_fallthru
      _
    // Predicated region
    $region18: #{tpu_custom_call.1} parent=1 // pred_check
      _
    $region19: #{tpu_custom_call.1} parent=1 // pred_check_branch
      %64 = sbr.rel (0) target = $region21
    $region20: #{tpu_custom_call.1} parent=1 // pred_region
      %s66 = ssub.s32 1024, 1024
      %67 = vsyncadd [#allocation9], %s66
      %s68 = sshll.u32 [#allocation10], 4
      %s69 = int_to_ptr.vmem [resolvable:$true] %s68
      %74 = dma.hbm_to_vmem [thread:$0]  %s4, 1024, %s69, [#allocation9], 64, 64, 4
    $region21: #{tpu_custom_call.1} parent=1 // pred_fallthru
      _
    // Predicated region
    $region22: #{tpu_custom_call.1} parent=1 // pred_check
      _
    $region23: #{tpu_custom_call.1} parent=1 // pred_check_branch
      %76 = sbr.rel (0) target = $region25
    $region24: #{tpu_custom_call.1} parent=1 // pred_region
      %s78 = ssub.s32 2048, 2048
      %79 = vsyncadd [#allocation12], %s78
      %s80 = sshll.u32 [#allocation11], 4
      %s81 = int_to_ptr.vmem [resolvable:$true] %s80
      %86 = dma.hbm_to_vmem [thread:$0]  %s5, 2048, %s81, [#allocation12], 128, 128, 8
    $region25: #{tpu_custom_call.1} parent=1 // pred_fallthru
      _
    // Predicated region
    $region26: #{tpu_custom_call.1} parent=1 // pred_check
      _
    $region27: #{tpu_custom_call.1} parent=1 // pred_check_branch
      %88 = sbr.rel (0) target = $region29
    $region28: #{tpu_custom_call.1} parent=1 // pred_region
      %s90 = ssub.s32 2048, 2048
      %91 = vsyncadd [#allocation12], %s90
      %s92 = sshll.u32 [#allocation13], 4
      %s93 = int_to_ptr.vmem [resolvable:$true] %s92
      %98 = dma.hbm_to_vmem [thread:$0]  %s6, 2048, %s93, [#allocation12], 64, 64, 4
    $region29: #{tpu_custom_call.1} parent=1 // pred_fallthru
      _
    // Predicated region
    $region30: #{tpu_custom_call.1} parent=1 // pred_check
      _
    $region31: #{tpu_custom_call.1} parent=1 // pred_check_branch
      %100 = sbr.rel (0) target = $region33
    $region32: #{tpu_custom_call.1} parent=1 // pred_region
      %101 = dma.done [#allocation3], 128
    $region33: #{tpu_custom_call.1} parent=1 // pred_fallthru
      _
    // Predicated region
    $region34: #{tpu_custom_call.1} parent=1 // pred_check
      _
    $region35: #{tpu_custom_call.1} parent=1 // pred_check_branch
      %103 = sbr.rel (0) target = $region37
    $region36: #{tpu_custom_call.1} parent=1 // pred_region
      %104 = dma.done [#allocation6], 256
    $region37: #{tpu_custom_call.1} parent=1 // pred_fallthru
      _
    // Predicated region
    $region38: #{tpu_custom_call.1} parent=1 // pred_check
      _
    $region39: #{tpu_custom_call.1} parent=1 // pred_check_branch
      %106 = sbr.rel (0) target = $region41
    $region40: #{tpu_custom_call.1} parent=1 // pred_region
      %107 = dma.done [#allocation6], 256
    $region41: #{tpu_custom_call.1} parent=1 // pred_fallthru
      _
    // Predicated region
    $region42: #{tpu_custom_call.1} parent=1 // pred_check
      _
    $region43: #{tpu_custom_call.1} parent=1 // pred_check_branch
      %109 = sbr.rel (0) target = $region45
    $region44: #{tpu_custom_call.1} parent=1 // pred_region
      %110 = dma.done [#allocation9], 1024
    $region45: #{tpu_custom_call.1} parent=1 // pred_fallthru
      _
    // Predicated region
    $region46: #{tpu_custom_call.1} parent=1 // pred_check
      _
    $region47: #{tpu_custom_call.1} parent=1 // pred_check_branch
      %112 = sbr.rel (0) target = $region49
    $region48: #{tpu_custom_call.1} parent=1 // pred_region
      %113 = dma.done [#allocation9], 1024
    $region49: #{tpu_custom_call.1} parent=1 // pred_fallthru
      _
    // Predicated region
    $region50: #{tpu_custom_call.1} parent=1 // pred_check
      _
    $region51: #{tpu_custom_call.1} parent=1 // pred_check_branch
      %115 = sbr.rel (0) target = $region53
    $region52: #{tpu_custom_call.1} parent=1 // pred_region
      %116 = dma.done [#allocation12], 2048
    $region53: #{tpu_custom_call.1} parent=1 // pred_fallthru
      _
    // Predicated region
    $region54: #{tpu_custom_call.1} parent=1 // pred_check
      _
    $region55: #{tpu_custom_call.1} parent=1 // pred_check_branch
      %118 = sbr.rel (0) target = $region57
    $region56: #{tpu_custom_call.1} parent=1 // pred_region
      %119 = dma.done [#allocation12], 2048
    $region57: #{tpu_custom_call.1} parent=1 // pred_fallthru
      _
    %v121 = vld [vmem:[#allocation5] sm:$0x1f]
    %v122 = vld [vmem:[#allocation5 + $0x8] sm:$0x1f]
    %v123 = vld [vmem:[#allocation2] sm:$0xf]
    %v124 = vld [vmem:[#allocation2 + $0x4] sm:$0xf]
    %v125 = vld [vmem:[#allocation7] sm:$0xf]
    %v126 = vld [vmem:[#allocation7 + $0x4] sm:$0xf]
    %v127 = vld [vmem:[#allocation7 + $0x8] sm:$0xf]
    %v128 = vld [vmem:[#allocation7 + $0xc] sm:$0xf]
    %v129 = vlaneseq
    %v130 = vshrl.u32 %v129, 7
    %v131 = vsub.s32 0, %v130
    %v132 = vrot.slane %v121, %v131
    %v135 = vunpack.c.l.b16 %v123
    %v136 = vunpack.c.l.b16 %v124
    %v137 = vpack.c.b16 %v136, %v135
    %v142 = vunpack.c.l.b16 %v125
    %v143 = vunpack.c.l.b16 %v126
    %v144 = vunpack.c.l.b16 %v127
    %v145 = vunpack.c.l.b16 %v128
    %v146 = vpack.c.b16 %v143, %v142
    %v147 = vpack.c.b16 %v145, %v144
    %vm150 = vcmask 261120
    %v152 = vsel %vm150, %v137, 0
    %154 = vmatprep.subr.bf16.mxu0 0
    %155 = vmatpush1.bf16.msra.mxu0 %v146
    %156 = vmatprep.subr.bf16.mxu0 0
    %157 = vmatpush1.bf16.msra.mxu0 %v147
    %158 = vmatprep.subr.bf16.mxu0 0
    %159 = vmatpush1.bf16.msra.mxu0 0
    %160 = vmatprep.subr.bf16.mxu0 0
    %161 = vmatpush1.bf16.msra.mxu0 0
    %162 = vmatprep.subr.bf16.mxu0 0
    %163 = vmatpush1.bf16.msra.mxu0 0
    %164 = vmatprep.subr.bf16.mxu0 0
    %165 = vmatpush1.bf16.msra.mxu0 0
    %166 = vmatprep.subr.bf16.mxu0 0
    %167 = vmatpush1.bf16.msra.mxu0 0
    %168 = vmatprep.subr.bf16.mxu0 0
    %169 = vmatpush1.bf16.msra.mxu0 0
    %170 = vmatprep.subr.bf16.mxu0 0
    %171 = vmatpush1.bf16.msra.mxu0 0
    %172 = vmatprep.subr.bf16.mxu0 0
    %173 = vmatpush1.bf16.msra.mxu0 0
    %174 = vmatprep.subr.bf16.mxu0 0
    %175 = vmatpush1.bf16.msra.mxu0 0
    %176 = vmatprep.subr.bf16.mxu0 0
    %177 = vmatpush1.bf16.msra.mxu0 0
    %178 = vmatprep.subr.bf16.mxu0 0
    %179 = vmatpush1.bf16.msra.mxu0 0
    %180 = vmatprep.subr.bf16.mxu0 0
    %181 = vmatpush1.bf16.msra.mxu0 0
    %182 = vmatprep.subr.bf16.mxu0 0
    %183 = vmatpush1.bf16.msra.mxu0 0
    %184 = vmatprep.subr.bf16.mxu0 0
    %185 = vmatpush1.bf16.msra.mxu0 0
    %186 = vmatprep.mubr.bf16.mxu0 0
    %187 = vmatmul.mubr.bf16.gmra.mrb[0].mxu0 %v152
    %v188 = vpop.f32.mrb[0].mxu0
    %v189 = vadd.f32 %v132, %v188
    %v190 = vpop.f32.mrb[0].mxu0
    %v191 = vpop.f32.mrb[0].mxu0
    %v192 = vadd.f32 %v132, %v191
    %v193 = vpop.f32.mrb[0].mxu0
    %194 = vdwg.mxu0
    %v195 = vmul.f32 %v189, 0.2
    %v196 = vmul.f32 %v192, 0.2
    %v197 = vmax.f32 %v189, %v195
    %v198 = vmax.f32 %v192, %v196
    %v199 = vpack.c.bf16 %v198, %v197
    %v200 = vld [vmem:[#allocation8] sm:$0xf]
    %v201 = vld [vmem:[#allocation8 + $0x4] sm:$0xf]
    %v202 = vld [vmem:[#allocation8 + $0x8] sm:$0xf]
    %v203 = vld [vmem:[#allocation8 + $0xc] sm:$0xf]
    %v204 = vld [vmem:[#allocation8 + $0x10] sm:$0xf]
    %v205 = vld [vmem:[#allocation8 + $0x14] sm:$0xf]
    %v206 = vld [vmem:[#allocation8 + $0x18] sm:$0xf]
    %v207 = vld [vmem:[#allocation8 + $0x1c] sm:$0xf]
    %v208 = vld [vmem:[#allocation8 + $0x20] sm:$0xf]
    %v209 = vld [vmem:[#allocation8 + $0x24] sm:$0xf]
    %v210 = vld [vmem:[#allocation8 + $0x28] sm:$0xf]
    %v211 = vld [vmem:[#allocation8 + $0x2c] sm:$0xf]
    %v212 = vld [vmem:[#allocation8 + $0x30] sm:$0xf]
    %v213 = vld [vmem:[#allocation8 + $0x34] sm:$0xf]
    %v214 = vld [vmem:[#allocation8 + $0x38] sm:$0xf]
    %v215 = vld [vmem:[#allocation8 + $0x3c] sm:$0xf]
    %v216 = vlaneseq
    %v217 = vshrl.u32 %v216, 7
    %v218 = vsub.s32 1, %v217
    %v219 = vrot.slane %v121, %v218
    %v236 = vunpack.c.l.b16 %v200
    %v237 = vunpack.c.l.b16 %v201
    %v238 = vunpack.c.l.b16 %v202
    %v239 = vunpack.c.l.b16 %v203
    %v240 = vunpack.c.l.b16 %v204
    %v241 = vunpack.c.l.b16 %v205
    %v242 = vunpack.c.l.b16 %v206
    %v243 = vunpack.c.l.b16 %v207
    %v244 = vunpack.c.l.b16 %v208
    %v245 = vunpack.c.l.b16 %v209
    %v246 = vunpack.c.l.b16 %v210
    %v247 = vunpack.c.l.b16 %v211
    %v248 = vunpack.c.l.b16 %v212
    %v249 = vunpack.c.l.b16 %v213
    %v250 = vunpack.c.l.b16 %v214
    %v251 = vunpack.c.l.b16 %v215
    %v252 = vpack.c.b16 %v237, %v236
    %v253 = vpack.c.b16 %v239, %v238
    %v254 = vpack.c.b16 %v241, %v240
    %v255 = vpack.c.b16 %v243, %v242
    %v256 = vpack.c.b16 %v245, %v244
    %v257 = vpack.c.b16 %v247, %v246
    %v258 = vpack.c.b16 %v249, %v248
    %v259 = vpack.c.b16 %v251, %v250
    %268 = vmatprep.subr.bf16.mxu0 0
    %269 = vmatpush1.bf16.msra.mxu0 %v252
    %270 = vmatprep.subr.bf16.mxu0 0
    %271 = vmatpush1.bf16.msra.mxu0 %v253
    %272 = vmatprep.subr.bf16.mxu0 0
    %273 = vmatpush1.bf16.msra.mxu0 %v254
    %274 = vmatprep.subr.bf16.mxu0 0
    %275 = vmatpush1.bf16.msra.mxu0 %v255
    %276 = vmatprep.subr.bf16.mxu0 0
    %277 = vmatpush1.bf16.msra.mxu0 %v256
    %278 = vmatprep.subr.bf16.mxu0 0
    %279 = vmatpush1.bf16.msra.mxu0 %v257
    %280 = vmatprep.subr.bf16.mxu0 0
    %281 = vmatpush1.bf16.msra.mxu0 %v258
    %282 = vmatprep.subr.bf16.mxu0 0
    %283 = vmatpush1.bf16.msra.mxu0 %v259
    %284 = vmatprep.subr.bf16.mxu0 0
    %285 = vmatpush1.bf16.msra.mxu0 0
    %286 = vmatprep.subr.bf16.mxu0 0
    %287 = vmatpush1.bf16.msra.mxu0 0
    %288 = vmatprep.subr.bf16.mxu0 0
    %289 = vmatpush1.bf16.msra.mxu0 0
    %290 = vmatprep.subr.bf16.mxu0 0
    %291 = vmatpush1.bf16.msra.mxu0 0
    %292 = vmatprep.subr.bf16.mxu0 0
    %293 = vmatpush1.bf16.msra.mxu0 0
    %294 = vmatprep.subr.bf16.mxu0 0
    %295 = vmatpush1.bf16.msra.mxu0 0
    %296 = vmatprep.subr.bf16.mxu0 0
    %297 = vmatpush1.bf16.msra.mxu0 0
    %298 = vmatprep.subr.bf16.mxu0 0
    %299 = vmatpush1.bf16.msra.mxu0 0
    %300 = vmatprep.mubr.bf16.mxu0 0
    %301 = vmatmul.mubr.bf16.gmra.mrb[0].mxu0 %v199
    %v302 = vpop.f32.mrb[0].mxu0
    %v303 = vadd.f32 %v219, %v302
    %v304 = vpop.f32.mrb[0].mxu0
    %v305 = vpop.f32.mrb[0].mxu0
    %v306 = vadd.f32 %v219, %v305
    %v307 = vpop.f32.mrb[0].mxu0
    %308 = vdwg.mxu0
    %v309 = vmul.f32 %v303, 0.2
    %v310 = vmul.f32 %v306, 0.2
    %v311 = vmax.f32 %v303, %v309
    %v312 = vmax.f32 %v306, %v310
    %v313 = vpack.c.bf16 %v312, %v311
    %v314 = vld [vmem:[#allocation10] sm:$0xf]
    %v315 = vld [vmem:[#allocation10 + $0x4] sm:$0xf]
    %v316 = vld [vmem:[#allocation10 + $0x8] sm:$0xf]
    %v317 = vld [vmem:[#allocation10 + $0xc] sm:$0xf]
    %v318 = vld [vmem:[#allocation10 + $0x10] sm:$0xf]
    %v319 = vld [vmem:[#allocation10 + $0x14] sm:$0xf]
    %v320 = vld [vmem:[#allocation10 + $0x18] sm:$0xf]
    %v321 = vld [vmem:[#allocation10 + $0x1c] sm:$0xf]
    %v322 = vld [vmem:[#allocation10 + $0x20] sm:$0xf]
    %v323 = vld [vmem:[#allocation10 + $0x24] sm:$0xf]
    %v324 = vld [vmem:[#allocation10 + $0x28] sm:$0xf]
    %v325 = vld [vmem:[#allocation10 + $0x2c] sm:$0xf]
    %v326 = vld [vmem:[#allocation10 + $0x30] sm:$0xf]
    %v327 = vld [vmem:[#allocation10 + $0x34] sm:$0xf]
    %v328 = vld [vmem:[#allocation10 + $0x38] sm:$0xf]
    %v329 = vld [vmem:[#allocation10 + $0x3c] sm:$0xf]
    %v330 = vlaneseq
    %v331 = vshrl.u32 %v330, 7
    %v332 = vsub.s32 2, %v331
    %v333 = vrot.slane %v121, %v332
    %v350 = vunpack.c.l.b16 %v314
    %v351 = vunpack.c.l.b16 %v315
    %v352 = vunpack.c.l.b16 %v316
    %v353 = vunpack.c.l.b16 %v317
    %v354 = vunpack.c.l.b16 %v318
    %v355 = vunpack.c.l.b16 %v319
    %v356 = vunpack.c.l.b16 %v320
    %v357 = vunpack.c.l.b16 %v321
    %v358 = vunpack.c.l.b16 %v322
    %v359 = vunpack.c.l.b16 %v323
    %v360 = vunpack.c.l.b16 %v324
    %v361 = vunpack.c.l.b16 %v325
    %v362 = vunpack.c.l.b16 %v326
    %v363 = vunpack.c.l.b16 %v327
    %v364 = vunpack.c.l.b16 %v328
    %v365 = vunpack.c.l.b16 %v329
    %v366 = vpack.c.b16 %v351, %v350
    %v367 = vpack.c.b16 %v353, %v352
    %v368 = vpack.c.b16 %v355, %v354
    %v369 = vpack.c.b16 %v357, %v356
    %v370 = vpack.c.b16 %v359, %v358
    %v371 = vpack.c.b16 %v361, %v360
    %v372 = vpack.c.b16 %v363, %v362
    %v373 = vpack.c.b16 %v365, %v364
    %382 = vmatprep.subr.bf16.mxu0 0
    %383 = vmatpush1.bf16.msra.mxu0 %v366
    %384 = vmatprep.subr.bf16.mxu0 0
    %385 = vmatpush1.bf16.msra.mxu0 %v367
    %386 = vmatprep.subr.bf16.mxu0 0
    %387 = vmatpush1.bf16.msra.mxu0 %v368
    %388 = vmatprep.subr.bf16.mxu0 0
    %389 = vmatpush1.bf16.msra.mxu0 %v369
    %390 = vmatprep.subr.bf16.mxu0 0
    %391 = vmatpush1.bf16.msra.mxu0 %v370
    %392 = vmatprep.subr.bf16.mxu0 0
    %393 = vmatpush1.bf16.msra.mxu0 %v371
    %394 = vmatprep.subr.bf16.mxu0 0
    %395 = vmatpush1.bf16.msra.mxu0 %v372
    %396 = vmatprep.subr.bf16.mxu0 0
    %397 = vmatpush1.bf16.msra.mxu0 %v373
    %398 = vmatprep.subr.bf16.mxu0 0
    %399 = vmatpush1.bf16.msra.mxu0 0
    %400 = vmatprep.subr.bf16.mxu0 0
    %401 = vmatpush1.bf16.msra.mxu0 0
    %402 = vmatprep.subr.bf16.mxu0 0
    %403 = vmatpush1.bf16.msra.mxu0 0
    %404 = vmatprep.subr.bf16.mxu0 0
    %405 = vmatpush1.bf16.msra.mxu0 0
    %406 = vmatprep.subr.bf16.mxu0 0
    %407 = vmatpush1.bf16.msra.mxu0 0
    %408 = vmatprep.subr.bf16.mxu0 0
    %409 = vmatpush1.bf16.msra.mxu0 0
    %410 = vmatprep.subr.bf16.mxu0 0
    %411 = vmatpush1.bf16.msra.mxu0 0
    %412 = vmatprep.subr.bf16.mxu0 0
    %413 = vmatpush1.bf16.msra.mxu0 0
    %414 = vmatprep.mubr.bf16.mxu0 0
    %415 = vmatmul.mubr.bf16.gmra.mrb[0].mxu0 %v313
    %v416 = vpop.f32.mrb[0].mxu0
    %v417 = vadd.f32 %v333, %v416
    %v418 = vpop.f32.mrb[0].mxu0
    %v419 = vpop.f32.mrb[0].mxu0
    %v420 = vadd.f32 %v333, %v419
    %v421 = vpop.f32.mrb[0].mxu0
    %422 = vdwg.mxu0
    %v423 = vmul.f32 %v417, 0.2
    %v424 = vmul.f32 %v420, 0.2
    %v425 = vmax.f32 %v417, %v423
    %v426 = vmax.f32 %v420, %v424
    %v427 = vpack.c.bf16 %v426, %v425
    %v428 = vld [vmem:[#allocation11] sm:$0xff]
    %v429 = vld [vmem:[#allocation11 + $0x8] sm:$0xff]
    %v430 = vld [vmem:[#allocation11 + $0x10] sm:$0xff]
    %v431 = vld [vmem:[#allocation11 + $0x18] sm:$0xff]
    %v432 = vld [vmem:[#allocation11 + $0x20] sm:$0xff]
    %v433 = vld [vmem:[#allocation11 + $0x28] sm:$0xff]
    %v434 = vld [vmem:[#allocation11 + $0x30] sm:$0xff]
    %v435 = vld [vmem:[#allocation11 + $0x38] sm:$0xff]
    %v436 = vld [vmem:[#allocation11 + $0x40] sm:$0xff]
    %v437 = vld [vmem:[#allocation11 + $0x48] sm:$0xff]
    %v438 = vld [vmem:[#allocation11 + $0x50] sm:$0xff]
    %v439 = vld [vmem:[#allocation11 + $0x58] sm:$0xff]
    %v440 = vld [vmem:[#allocation11 + $0x60] sm:$0xff]
    %v441 = vld [vmem:[#allocation11 + $0x68] sm:$0xff]
    %v442 = vld [vmem:[#allocation11 + $0x70] sm:$0xff]
    %v443 = vld [vmem:[#allocation11 + $0x78] sm:$0xff]
    %v444 = vlaneseq
    %v445 = vshrl.u32 %v444, 7
    %v446 = vsub.s32 3, %v445
    %v447 = vrot.slane %v121, %v446
    %v448 = vlaneseq
    %v449 = vshrl.u32 %v448, 7
    %v450 = vsub.s32 3, %v449
    %v451 = vrot.slane %v122, %v450
    %v468 = vunpack.c.l.b16 %v428
    %v469 = vunpack.c.h.b16 %v428
    %v470 = vunpack.c.l.b16 %v429
    %v471 = vunpack.c.h.b16 %v429
    %v472 = vunpack.c.l.b16 %v430
    %v473 = vunpack.c.h.b16 %v430
    %v474 = vunpack.c.l.b16 %v431
    %v475 = vunpack.c.h.b16 %v431
    %v476 = vunpack.c.l.b16 %v432
    %v477 = vunpack.c.h.b16 %v432
    %v478 = vunpack.c.l.b16 %v433
    %v479 = vunpack.c.h.b16 %v433
    %v480 = vunpack.c.l.b16 %v434
    %v481 = vunpack.c.h.b16 %v434
    %v482 = vunpack.c.l.b16 %v435
    %v483 = vunpack.c.h.b16 %v435
    %v484 = vunpack.c.l.b16 %v436
    %v485 = vunpack.c.h.b16 %v436
    %v486 = vunpack.c.l.b16 %v437
    %v487 = vunpack.c.h.b16 %v437
    %v488 = vunpack.c.l.b16 %v438
    %v489 = vunpack.c.h.b16 %v438
    %v490 = vunpack.c.l.b16 %v439
    %v491 = vunpack.c.h.b16 %v439
    %v492 = vunpack.c.l.b16 %v440
    %v493 = vunpack.c.h.b16 %v440
    %v494 = vunpack.c.l.b16 %v441
    %v495 = vunpack.c.h.b16 %v441
    %v496 = vunpack.c.l.b16 %v442
    %v497 = vunpack.c.h.b16 %v442
    %v498 = vunpack.c.l.b16 %v443
    %v499 = vunpack.c.h.b16 %v443
    %v500 = vpack.c.b16 %v470, %v468
    %v501 = vpack.c.b16 %v471, %v469
    %v502 = vpack.c.b16 %v474, %v472
    %v503 = vpack.c.b16 %v475, %v473
    %v504 = vpack.c.b16 %v478, %v476
    %v505 = vpack.c.b16 %v479, %v477
    %v506 = vpack.c.b16 %v482, %v480
    %v507 = vpack.c.b16 %v483, %v481
    %v508 = vpack.c.b16 %v486, %v484
    %v509 = vpack.c.b16 %v487, %v485
    %v510 = vpack.c.b16 %v490, %v488
    %v511 = vpack.c.b16 %v491, %v489
    %v512 = vpack.c.b16 %v494, %v492
    %v513 = vpack.c.b16 %v495, %v493
    %v514 = vpack.c.b16 %v498, %v496
    %v515 = vpack.c.b16 %v499, %v497
    %532 = vmatprep.subr.bf16.mxu0 %v501
    %533 = vmatpush1.bf16.msra.mxu0 %v500
    %534 = vmatprep.subr.bf16.mxu0 %v503
    %535 = vmatpush1.bf16.msra.mxu0 %v502
    %536 = vmatprep.subr.bf16.mxu0 %v505
    %537 = vmatpush1.bf16.msra.mxu0 %v504
    %538 = vmatprep.subr.bf16.mxu0 %v507
    %539 = vmatpush1.bf16.msra.mxu0 %v506
    %540 = vmatprep.subr.bf16.mxu0 %v509
    %541 = vmatpush1.bf16.msra.mxu0 %v508
    %542 = vmatprep.subr.bf16.mxu0 %v511
    %543 = vmatpush1.bf16.msra.mxu0 %v510
    %544 = vmatprep.subr.bf16.mxu0 %v513
    %545 = vmatpush1.bf16.msra.mxu0 %v512
    %546 = vmatprep.subr.bf16.mxu0 %v515
    %547 = vmatpush1.bf16.msra.mxu0 %v514
    %548 = vmatprep.subr.bf16.mxu0 0
    %549 = vmatpush1.bf16.msra.mxu0 0
    %550 = vmatprep.subr.bf16.mxu0 0
    %551 = vmatpush1.bf16.msra.mxu0 0
    %552 = vmatprep.subr.bf16.mxu0 0
    %553 = vmatpush1.bf16.msra.mxu0 0
    %554 = vmatprep.subr.bf16.mxu0 0
    %555 = vmatpush1.bf16.msra.mxu0 0
    %556 = vmatprep.subr.bf16.mxu0 0
    %557 = vmatpush1.bf16.msra.mxu0 0
    %558 = vmatprep.subr.bf16.mxu0 0
    %559 = vmatpush1.bf16.msra.mxu0 0
    %560 = vmatprep.subr.bf16.mxu0 0
    %561 = vmatpush1.bf16.msra.mxu0 0
    %562 = vmatprep.subr.bf16.mxu0 0
    %563 = vmatpush1.bf16.msra.mxu0 0
    %564 = vmatprep.mubr.bf16.mxu0 0
    %565 = vmatmul.mubr.bf16.gmra.mrb[0].mxu0 %v427
    %v566 = vpop.f32.mrb[0].mxu0
    %v567 = vadd.f32 %v447, %v566
    %v568 = vpop.f32.mrb[0].mxu0
    %v569 = vadd.f32 %v451, %v568
    %v570 = vpop.f32.mrb[0].mxu0
    %v571 = vadd.f32 %v447, %v570
    %v572 = vpop.f32.mrb[0].mxu0
    %v573 = vadd.f32 %v451, %v572
    %574 = vdwg.mxu0
    %v575 = vmul.f32 %v567, 0.2
    %v576 = vmul.f32 %v569, 0.2
    %v577 = vmul.f32 %v571, 0.2
    %v578 = vmul.f32 %v573, 0.2
    %v579 = vmax.f32 %v567, %v575
    %v580 = vmax.f32 %v569, %v576
    %v581 = vmax.f32 %v571, %v577
    %v582 = vmax.f32 %v573, %v578
    %v583 = vpack.c.bf16 %v581, %v579
    %v584 = vpack.c.bf16 %v582, %v580
    %v585 = vld [vmem:[#allocation13] sm:$0xf]
    %v586 = vld [vmem:[#allocation13 + $0x4] sm:$0xf]
    %v587 = vld [vmem:[#allocation13 + $0x8] sm:$0xf]
    %v588 = vld [vmem:[#allocation13 + $0xc] sm:$0xf]
    %v589 = vld [vmem:[#allocation13 + $0x10] sm:$0xf]
    %v590 = vld [vmem:[#allocation13 + $0x14] sm:$0xf]
    %v591 = vld [vmem:[#allocation13 + $0x18] sm:$0xf]
    %v592 = vld [vmem:[#allocation13 + $0x1c] sm:$0xf]
    %v593 = vld [vmem:[#allocation13 + $0x20] sm:$0xf]
    %v594 = vld [vmem:[#allocation13 + $0x24] sm:$0xf]
    %v595 = vld [vmem:[#allocation13 + $0x28] sm:$0xf]
    %v596 = vld [vmem:[#allocation13 + $0x2c] sm:$0xf]
    %v597 = vld [vmem:[#allocation13 + $0x30] sm:$0xf]
    %v598 = vld [vmem:[#allocation13 + $0x34] sm:$0xf]
    %v599 = vld [vmem:[#allocation13 + $0x38] sm:$0xf]
    %v600 = vld [vmem:[#allocation13 + $0x3c] sm:$0xf]
    %v601 = vld [vmem:[#allocation13 + $0x40] sm:$0xf]
    %v602 = vld [vmem:[#allocation13 + $0x44] sm:$0xf]
    %v603 = vld [vmem:[#allocation13 + $0x48] sm:$0xf]
    %v604 = vld [vmem:[#allocation13 + $0x4c] sm:$0xf]
    %v605 = vld [vmem:[#allocation13 + $0x50] sm:$0xf]
    %v606 = vld [vmem:[#allocation13 + $0x54] sm:$0xf]
    %v607 = vld [vmem:[#allocation13 + $0x58] sm:$0xf]
    %v608 = vld [vmem:[#allocation13 + $0x5c] sm:$0xf]
    %v609 = vld [vmem:[#allocation13 + $0x60] sm:$0xf]
    %v610 = vld [vmem:[#allocation13 + $0x64] sm:$0xf]
    %v611 = vld [vmem:[#allocation13 + $0x68] sm:$0xf]
    %v612 = vld [vmem:[#allocation13 + $0x6c] sm:$0xf]
    %v613 = vld [vmem:[#allocation13 + $0x70] sm:$0xf]
    %v614 = vld [vmem:[#allocation13 + $0x74] sm:$0xf]
    %v615 = vld [vmem:[#allocation13 + $0x78] sm:$0xf]
    %v616 = vld [vmem:[#allocation13 + $0x7c] sm:$0xf]
    %v617 = vlaneseq
    %v618 = vshrl.u32 %v617, 7
    %v619 = vsub.s32 4, %v618
    %v620 = vrot.slane %v121, %v619
    %v653 = vunpack.c.l.b16 %v585
    %v654 = vunpack.c.l.b16 %v586
    %v655 = vunpack.c.l.b16 %v587
    %v656 = vunpack.c.l.b16 %v588
    %v657 = vunpack.c.l.b16 %v589
    %v658 = vunpack.c.l.b16 %v590
    %v659 = vunpack.c.l.b16 %v591
    %v660 = vunpack.c.l.b16 %v592
    %v661 = vunpack.c.l.b16 %v593
    %v662 = vunpack.c.l.b16 %v594
    %v663 = vunpack.c.l.b16 %v595
    %v664 = vunpack.c.l.b16 %v596
    %v665 = vunpack.c.l.b16 %v597
    %v666 = vunpack.c.l.b16 %v598
    %v667 = vunpack.c.l.b16 %v599
    %v668 = vunpack.c.l.b16 %v600
    %v669 = vunpack.c.l.b16 %v601
    %v670 = vunpack.c.l.b16 %v602
    %v671 = vunpack.c.l.b16 %v603
    %v672 = vunpack.c.l.b16 %v604
    %v673 = vunpack.c.l.b16 %v605
    %v674 = vunpack.c.l.b16 %v606
    %v675 = vunpack.c.l.b16 %v607
    %v676 = vunpack.c.l.b16 %v608
    %v677 = vunpack.c.l.b16 %v609
    %v678 = vunpack.c.l.b16 %v610
    %v679 = vunpack.c.l.b16 %v611
    %v680 = vunpack.c.l.b16 %v612
    %v681 = vunpack.c.l.b16 %v613
    %v682 = vunpack.c.l.b16 %v614
    %v683 = vunpack.c.l.b16 %v615
    %v684 = vunpack.c.l.b16 %v616
    %v685 = vpack.c.b16 %v654, %v653
    %v686 = vpack.c.b16 %v656, %v655
    %v687 = vpack.c.b16 %v658, %v657
    %v688 = vpack.c.b16 %v660, %v659
    %v689 = vpack.c.b16 %v662, %v661
    %v690 = vpack.c.b16 %v664, %v663
    %v691 = vpack.c.b16 %v666, %v665
    %v692 = vpack.c.b16 %v668, %v667
    %v693 = vpack.c.b16 %v670, %v669
    %v694 = vpack.c.b16 %v672, %v671
    %v695 = vpack.c.b16 %v674, %v673
    %v696 = vpack.c.b16 %v676, %v675
    %v697 = vpack.c.b16 %v678, %v677
    %v698 = vpack.c.b16 %v680, %v679
    %v699 = vpack.c.b16 %v682, %v681
    %v700 = vpack.c.b16 %v684, %v683
    %717 = vmatprep.subr.bf16.mxu0 0
    %718 = vmatpush1.bf16.msra.mxu0 %v685
    %719 = vmatprep.subr.bf16.mxu0 0
    %720 = vmatpush1.bf16.msra.mxu0 %v686
    %721 = vmatprep.subr.bf16.mxu0 0
    %722 = vmatpush1.bf16.msra.mxu0 %v687
    %723 = vmatprep.subr.bf16.mxu0 0
    %724 = vmatpush1.bf16.msra.mxu0 %v688
    %725 = vmatprep.subr.bf16.mxu0 0
    %726 = vmatpush1.bf16.msra.mxu0 %v689
    %727 = vmatprep.subr.bf16.mxu0 0
    %728 = vmatpush1.bf16.msra.mxu0 %v690
    %729 = vmatprep.subr.bf16.mxu0 0
    %730 = vmatpush1.bf16.msra.mxu0 %v691
    %731 = vmatprep.subr.bf16.mxu0 0
    %732 = vmatpush1.bf16.msra.mxu0 %v692
    %733 = vmatprep.subr.bf16.mxu0 0
    %734 = vmatpush1.bf16.msra.mxu0 %v693
    %735 = vmatprep.subr.bf16.mxu0 0
    %736 = vmatpush1.bf16.msra.mxu0 %v694
    %737 = vmatprep.subr.bf16.mxu0 0
    %738 = vmatpush1.bf16.msra.mxu0 %v695
    %739 = vmatprep.subr.bf16.mxu0 0
    %740 = vmatpush1.bf16.msra.mxu0 %v696
    %741 = vmatprep.subr.bf16.mxu0 0
    %742 = vmatpush1.bf16.msra.mxu0 %v697
    %743 = vmatprep.subr.bf16.mxu0 0
    %744 = vmatpush1.bf16.msra.mxu0 %v698
    %745 = vmatprep.subr.bf16.mxu0 0
    %746 = vmatpush1.bf16.msra.mxu0 %v699
    %747 = vmatprep.subr.bf16.mxu0 0
    %748 = vmatpush1.bf16.msra.mxu0 %v700
    %749 = vmatprep.mubr.bf16.mxu0 %v584
    %750 = vmatmul.mubr.bf16.gmra.mrb[0].mxu0 %v583
    %v751 = vpop.f32.mrb[0].mxu0
    %v752 = vadd.f32 %v620, %v751
    %v753 = vpop.f32.mrb[0].mxu0
    %v754 = vpop.f32.mrb[0].mxu0
    %v755 = vadd.f32 %v620, %v754
    %v756 = vpop.f32.mrb[0].mxu0
    %757 = vdwg.mxu0
    %758 = vst [vmem:[#allocation14] sm:$0xff] %v752
    %759 = vst [vmem:[#allocation14 + $0x8] sm:$0xff] %v755
    // Predicated region
    $region58: #{tpu_custom_call.1} parent=1 // pred_check
      _
    $region59: #{tpu_custom_call.1} parent=1 // pred_check_branch
      %761 = sbr.rel (0) target = $region61
    $region60: #{tpu_custom_call.1} parent=1 // pred_region
      %s763 = ssub.s32 256, 256
      %764 = vsyncadd [#allocation4], %s763
      %s765 = sshll.u32 [#allocation14], 4
      %s766 = int_to_ptr.vmem [resolvable:$true] %s765
      %771 = dma.vmem_to_hbm [thread:$0]  %s766, 256, %s7, [#allocation4], 128, 128, 8
    $region61: #{tpu_custom_call.1} parent=1 // pred_fallthru
      _
    // Predicated region
    $region62: #{tpu_custom_call.1} parent=1 // pred_check
      _
    $region63: #{tpu_custom_call.1} parent=1 // pred_check_branch
      %773 = sbr.rel (0) target = $region65
    $region64: #{tpu_custom_call.1} parent=1 // pred_region
      %774 = dma.done [#allocation4], 256
    $region65: #{tpu_custom_call.1} parent=1 // pred_fallthru
      _
    %775 = vsyncpa [#allocation3], 1
    %776 = vsyncpa [#allocation6], 1
    %777 = vsyncpa [#allocation9], 1
    %778 = vsyncpa [#allocation12], 1
    %779 = vsyncpa [#allocation4], 1

</llo_original>
